<compile_context>
chip_gen: v6e
topology: v6e:2x2x1
jax: 0.10.0
libtpu: 0.0.40
codegen_flags: <defaults>
</compile_context>

<pallas_src>
import functools

import jax
import jax.numpy as jnp
from jax.experimental import pallas as pl
from jax.experimental.pallas import tpu as pltpu


def basicblock_kernel(x_ref, wb1_ref, wb2_ref, wb3_ref, g_ref, b_ref, o_ref,
                      *, C, H, inv_count):
    """Fused conv3x3->BN->LeakyReLU x3 + residual in a lane-dense layout.

    x_ref      : (N*H, W*C) f32 activations (W*C on the 128-lane axis)
    wbK_ref    : (3*W*C, W*C) bf16 stacked banded conv weights
                 (rows [0:L) = dy=-1 taps, [L:2L) = dy=0, [2L:3L) = dy=+1;
                  dx taps and zero padding along w are folded in)
    g_ref,b_ref: (3, W*C) f32 BN gamma/beta tiled onto the lane layout
    """
    eps = 1e-5
    alpha = 0.1  # LeakyReLU negative slope
    f32 = jnp.float32
    bf16 = jnp.bfloat16

    x = x_ref[...]
    NH, L = x.shape

    # Image-boundary masks for the dy=+/-1 halo, hoisted above all three convs.
    row = jax.lax.broadcasted_iota(jnp.int32, (NH, L), 0)
    top_mask = (row % H) != 0        # rows where v[h-1] exists in the same image
    bot_mask = (row % H) != (H - 1)  # rows where v[h+1] exists in the same image

    # BN per-channel reduce+broadcast matrix, generated in-kernel (no DMA):
    #   p[k, j] = 1/(N*H*W) if (k % C) == (j % C) else 0
    li = jax.lax.broadcasted_iota(jnp.int32, (L, L), 0)
    lj = jax.lax.broadcasted_iota(jnp.int32, (L, L), 1)
    p = jnp.where((li % C) == (lj % C), inv_count, 0.0).astype(f32)

    def conv3x3(v, wb_ref):
        # dy = +/-1 neighbours via XLU roll + VPU boundary mask (free under MXU
        # slack); dx neighbours + w-padding are folded into the banded weights;
        # all three dy taps fused into one lane-dense K=3L bf16 MXU matmul.
        v_up = jnp.where(bot_mask, pltpu.roll(v, NH - 1, axis=0), 0.0)  # v[h+1]
        v_dn = jnp.where(top_mask, pltpu.roll(v, 1, axis=0), 0.0)       # v[h-1]
        v_cat = jnp.concatenate([v_dn, v, v_up], axis=1).astype(bf16)   # (NH, 3L)
        return jnp.dot(v_cat, wb_ref[...], preferred_element_type=f32)  # (NH, L)

    def batchnorm(v, i):
        # Single-pass batch stats (training mode, biased variance), all in f32.
        # Row-sums of v and v*v are stacked so the per-channel (lane % C)
        # reduction + broadcast + 1/count scaling is one (2,L)@(L,L) matmul.
        stats = jnp.concatenate(
            [jnp.sum(v, axis=0, keepdims=True),
             jnp.sum(v * v, axis=0, keepdims=True)], axis=0)          # (2, L)
        red = jnp.dot(stats, p, preferred_element_type=f32)            # (2, L)
        mean = red[0:1, :]
        var = jnp.maximum(red[1:2, :] - mean * mean, 0.0)              # clamp
        scale = g_ref[i:i + 1, :] * jax.lax.rsqrt(var + eps)
        shift = b_ref[i:i + 1, :] - mean * scale
        return v * scale + shift

    def lrelu(v):
        return jnp.where(v > 0, v, alpha * v)

    out = lrelu(batchnorm(conv3x3(x, wb1_ref), 0))
    out = lrelu(batchnorm(conv3x3(out, wb2_ref), 1))
    out = batchnorm(conv3x3(out, wb3_ref), 2)
    out = lrelu(out + x)          # residual add (downsample=None) + LeakyReLU
    # MaxPool2d(kernel_size=stride=1) is the identity.
    o_ref[...] = out.astype(o_ref.dtype)   # lane-dense (last dim = W*C) store


def basic_block_forward(x_nchw, w1, w2, w3, gammas, betas):
    """x_nchw: (N, C, H, W); conv weights in PyTorch layout (Cout, Cin, 3, 3)."""
    N, C, H, W = x_nchw.shape
    L = W * C          # lane-axis width (128 for the demo shape)
    NH = N * H

    # NCHW -> NHWC -> lane-dense (N*H, W*C).
    x2d = jnp.transpose(x_nchw, (0, 2, 3, 1)).reshape(NH, L).astype(jnp.float32)

    def banded(w):
        # (Cout, Cin, 3, 3) -> (3L, L) bf16: one block-banded matrix per ky
        # (ky = dy+1), stacked along K so the three dy taps fuse into a single
        # MXU matmul. dx taps and zero padding along w are baked in:
        #   m_ky[(w+dx)*C + ci, w*C + co] = weight[co, ci, ky, dx+1]
        taps = jnp.transpose(w, (2, 3, 1, 0)).astype(jnp.float32)  # (ky,kx,Cin,Cout)
        mats = []
        for ky in range(3):
            m = jnp.zeros((L, L), jnp.float32)
            for kx in range(3):
                dx = kx - 1
                m = m + jnp.kron(jnp.eye(W, k=-dx, dtype=jnp.float32), taps[ky, kx])
            mats.append(m)
        # Row order [dy=-1, dy=0, dy=+1] matches concat([v_dn, v, v_up]).
        return jnp.concatenate(mats, axis=0).astype(jnp.bfloat16)   # (3L, L)

    wb1, wb2, wb3 = banded(w1), banded(w2), banded(w3)

    # BN affine params tiled onto the (W*C) lane layout: lane w*C + c -> gamma[c].
    g_l = jnp.tile(gammas.astype(jnp.float32), (1, W))
    b_l = jnp.tile(betas.astype(jnp.float32), (1, W))

    # Advisory cost estimate so XLA schedules around the call sensibly.
    flops = 3 * 2 * NH * (3 * L) * L + 3 * 2 * 2 * L * L
    bytes_accessed = (2 * NH * L * 4          # x in + out
                      + 3 * (3 * L) * L * 2   # bf16 banded weights
                      + 2 * 3 * L * 4)        # gamma/beta
    cost = pl.CostEstimate(flops=flops, transcendentals=3 * L,
                           bytes_accessed=bytes_accessed)

    kernel = functools.partial(basicblock_kernel, C=C, H=H,
                               inv_count=1.0 / float(N * H * W))

    vmem = pl.BlockSpec(memory_space=pltpu.MemorySpace.VMEM)
    out2d = pl.pallas_call(
        kernel,
        out_shape=jax.ShapeDtypeStruct((NH, L), jnp.float32),
        in_specs=[vmem] * 6,
        out_specs=vmem,
        compiler_params=pltpu.CompilerParams(
            vmem_limit_bytes=4 * 1024 * 1024),
        cost_estimate=cost,
    )(x2d, wb1, wb2, wb3, g_l, b_l)

    # (N*H, W*C) -> NHWC -> NCHW (layout untangling stays in the JAX wrapper).
    return jnp.transpose(out2d.reshape(N, H, W, C), (0, 3, 1, 2))


def _reference_forward(x, w1, w2, w3, gammas, betas):
    """Pure-JAX (f32) reference mirroring the PyTorch BasicBlock defaults."""
    def conv(v, w):
        return jax.lax.conv_general_dilated(
            v, w, window_strides=(1, 1), padding=((1, 1), (1, 1)),
            dimension_numbers=("NCHW", "OIHW", "NCHW"))

    def bn(v, i):
        mean = jnp.mean(v, axis=(0, 2, 3), keepdims=True)
        var = jnp.mean(jnp.square(v - mean), axis=(0, 2, 3), keepdims=True)
        g = gammas[i].reshape(1, -1, 1, 1)
        b = betas[i].reshape(1, -1, 1, 1)
        return (v - mean) * jax.lax.rsqrt(var + 1e-5) * g + b

    def lrelu(v):
        return jnp.where(v > 0, v, 0.1 * v)

    out = lrelu(bn(conv(x, w1), 0))
    out = lrelu(bn(conv(out, w2), 1))
    out = bn(conv(out, w3), 2)
    return lrelu(out + x)


if __name__ == "__main__":
    # Small shapes: batch=2, inplanes=planes=8, spatial 16x16 (NCHW input).
    # W*C = 16*8 = 128 -> the kernel's lane axis is exactly one full vreg row.
    N, C, H, W = 2, 8, 16, 16
    key = jax.random.PRNGKey(0)
    kx, k1, k2, k3, kg, kb = jax.random.split(key, 6)

    x = jax.random.normal(kx, (N, C, H, W), dtype=jnp.float32)
    # conv3x3 weights, PyTorch layout (Cout, Cin, 3, 3), bias=False
    w1 = 0.1 * jax.random.normal(k1, (C, C, 3, 3), dtype=jnp.float32)
    w2 = 0.1 * jax.random.normal(k2, (C, C, 3, 3), dtype=jnp.float32)
    w3 = 0.1 * jax.random.normal(k3, (C, C, 3, 3), dtype=jnp.float32)
    # BatchNorm affine params for bn1/bn2/bn3 (rows 0,1,2)
    gammas = 1.0 + 0.1 * jax.random.normal(kg, (3, C), dtype=jnp.float32)
    betas = 0.1 * jax.random.normal(kb, (3, C), dtype=jnp.float32)

    out = basic_block_forward(x, w1, w2, w3, gammas, betas)
    jax.block_until_ready(out)
    assert out.shape == (N, C, H, W)

    ref = _reference_forward(x, w1, w2, w3, gammas, betas)
    max_err = float(jnp.max(jnp.abs(out - ref)))
    # Tolerance loosened slightly vs the f32-MXU version: the conv matmuls now
    # use bf16 operands (f32 accumulation), per the perf review.
    assert jnp.allclose(out, ref, atol=5e-2, rtol=5e-2), max_err

    print("KERNEL_OK")
</pallas_src>

<mosaic_0001>
module attributes {stable_mosaic.version = 11 : i64} {
  func.func @basicblock_kernel(%arg0: memref<32x128xf32, #tpu.memory_space<vmem>>, %arg1: memref<384x128xbf16, #tpu.memory_space<vmem>>, %arg2: memref<384x128xbf16, #tpu.memory_space<vmem>>, %arg3: memref<384x128xbf16, #tpu.memory_space<vmem>>, %arg4: memref<3x128xf32, #tpu.memory_space<vmem>>, %arg5: memref<3x128xf32, #tpu.memory_space<vmem>>, %arg6: memref<32x128xf32, #tpu.memory_space<vmem>>) attributes {dimension_semantics = [], scalar_prefetch = 0 : i64, scratch_operands = 0 : i64, tpu.core_type = #tpu.core_type<tc>} {
    %c0 = arith.constant 0 : index
    %c0_0 = arith.constant 0 : index
    %0 = vector.load %arg0[%c0, %c0_0] : memref<32x128xf32, #tpu.memory_space<vmem>>, vector<32x128xf32>
    %1 = tpu.iota {dimensions = array<i32: 0>} : vector<32x128xi32>
    %c16_i32 = arith.constant 16 : i32
    %c0_i32 = arith.constant 0 : i32
    %2 = arith.cmpi eq, %c16_i32, %c0_i32 : i32
    %c1_i32 = arith.constant 1 : i32
    %3 = arith.select %2, %c1_i32, %c16_i32 : i32
    %4 = vector.broadcast %3 : i32 to vector<32x128xi32>
    %5 = arith.remsi %1, %4 : vector<32x128xi32>
    %c0_i32_1 = arith.constant 0 : i32
    %6 = vector.broadcast %c0_i32_1 : i32 to vector<32x128xi32>
    %7 = arith.cmpi ne, %5, %6 : vector<32x128xi32>
    %c0_i32_2 = arith.constant 0 : i32
    %8 = vector.broadcast %c0_i32_2 : i32 to vector<32x128xi32>
    %9 = arith.cmpi slt, %5, %8 : vector<32x128xi32>
    %c0_i32_3 = arith.constant 0 : i32
    %10 = arith.cmpi slt, %3, %c0_i32_3 : i32
    %11 = vector.broadcast %10 : i1 to vector<32x128xi1>
    %12 = vector.broadcast %11 : vector<32x128xi1> to vector<32x128xi1>
    %13 = arith.xori %9, %12 : vector<32x128xi1>
    %14 = arith.andi %13, %7 : vector<32x128xi1>
    %15 = vector.broadcast %3 : i32 to vector<32x128xi32>
    %16 = arith.addi %5, %15 : vector<32x128xi32>
    %17 = arith.select %14, %16, %5 : vector<32x128xi1>, vector<32x128xi32>
    %c0_i32_4 = arith.constant 0 : i32
    %18 = vector.broadcast %c0_i32_4 : i32 to vector<32x128xi32>
    %19 = arith.cmpi ne, %17, %18 : vector<32x128xi32>
    %c16_i32_5 = arith.constant 16 : i32
    %c0_i32_6 = arith.constant 0 : i32
    %20 = arith.cmpi eq, %c16_i32_5, %c0_i32_6 : i32
    %c1_i32_7 = arith.constant 1 : i32
    %21 = arith.select %20, %c1_i32_7, %c16_i32_5 : i32
    %22 = vector.broadcast %21 : i32 to vector<32x128xi32>
    %23 = arith.remsi %1, %22 : vector<32x128xi32>
    %c0_i32_8 = arith.constant 0 : i32
    %24 = vector.broadcast %c0_i32_8 : i32 to vector<32x128xi32>
    %25 = arith.cmpi ne, %23, %24 : vector<32x128xi32>
    %c0_i32_9 = arith.constant 0 : i32
    %26 = vector.broadcast %c0_i32_9 : i32 to vector<32x128xi32>
    %27 = arith.cmpi slt, %23, %26 : vector<32x128xi32>
    %c0_i32_10 = arith.constant 0 : i32
    %28 = arith.cmpi slt, %21, %c0_i32_10 : i32
    %29 = vector.broadcast %28 : i1 to vector<32x128xi1>
    %30 = vector.broadcast %29 : vector<32x128xi1> to vector<32x128xi1>
    %31 = arith.xori %27, %30 : vector<32x128xi1>
    %32 = arith.andi %31, %25 : vector<32x128xi1>
    %33 = vector.broadcast %21 : i32 to vector<32x128xi32>
    %34 = arith.addi %23, %33 : vector<32x128xi32>
    %35 = arith.select %32, %34, %23 : vector<32x128xi1>, vector<32x128xi32>
    %c15_i32 = arith.constant 15 : i32
    %36 = vector.broadcast %c15_i32 : i32 to vector<32x128xi32>
    %37 = arith.cmpi ne, %35, %36 : vector<32x128xi32>
    %38 = tpu.iota {dimensions = array<i32: 0>} : vector<128x128xi32>
    %39 = tpu.iota {dimensions = array<i32: 1>} : vector<128x128xi32>
    %c8_i32 = arith.constant 8 : i32
    %c0_i32_11 = arith.constant 0 : i32
    %40 = arith.cmpi eq, %c8_i32, %c0_i32_11 : i32
    %c1_i32_12 = arith.constant 1 : i32
    %41 = arith.select %40, %c1_i32_12, %c8_i32 : i32
    %42 = vector.broadcast %41 : i32 to vector<128x128xi32>
    %43 = arith.remsi %38, %42 : vector<128x128xi32>
    %c0_i32_13 = arith.constant 0 : i32
    %44 = vector.broadcast %c0_i32_13 : i32 to vector<128x128xi32>
    %45 = arith.cmpi ne, %43, %44 : vector<128x128xi32>
    %c0_i32_14 = arith.constant 0 : i32
    %46 = vector.broadcast %c0_i32_14 : i32 to vector<128x128xi32>
    %47 = arith.cmpi slt, %43, %46 : vector<128x128xi32>
    %c0_i32_15 = arith.constant 0 : i32
    %48 = arith.cmpi slt, %41, %c0_i32_15 : i32
    %49 = vector.broadcast %48 : i1 to vector<128x128xi1>
    %50 = vector.broadcast %49 : vector<128x128xi1> to vector<128x128xi1>
    %51 = arith.xori %47, %50 : vector<128x128xi1>
    %52 = arith.andi %51, %45 : vector<128x128xi1>
    %53 = vector.broadcast %41 : i32 to vector<128x128xi32>
    %54 = arith.addi %43, %53 : vector<128x128xi32>
    %55 = arith.select %52, %54, %43 : vector<128x128xi1>, vector<128x128xi32>
    %c8_i32_16 = arith.constant 8 : i32
    %c0_i32_17 = arith.constant 0 : i32
    %56 = arith.cmpi eq, %c8_i32_16, %c0_i32_17 : i32
    %c1_i32_18 = arith.constant 1 : i32
    %57 = arith.select %56, %c1_i32_18, %c8_i32_16 : i32
    %58 = vector.broadcast %57 : i32 to vector<128x128xi32>
    %59 = arith.remsi %39, %58 : vector<128x128xi32>
    %c0_i32_19 = arith.constant 0 : i32
    %60 = vector.broadcast %c0_i32_19 : i32 to vector<128x128xi32>
    %61 = arith.cmpi ne, %59, %60 : vector<128x128xi32>
    %c0_i32_20 = arith.constant 0 : i32
    %62 = vector.broadcast %c0_i32_20 : i32 to vector<128x128xi32>
    %63 = arith.cmpi slt, %59, %62 : vector<128x128xi32>
    %c0_i32_21 = arith.constant 0 : i32
    %64 = arith.cmpi slt, %57, %c0_i32_21 : i32
    %65 = vector.broadcast %64 : i1 to vector<128x128xi1>
    %66 = vector.broadcast %65 : vector<128x128xi1> to vector<128x128xi1>
    %67 = arith.xori %63, %66 : vector<128x128xi1>
    %68 = arith.andi %67, %61 : vector<128x128xi1>
    %69 = vector.broadcast %57 : i32 to vector<128x128xi32>
    %70 = arith.addi %59, %69 : vector<128x128xi32>
    %71 = arith.select %68, %70, %59 : vector<128x128xi1>, vector<128x128xi32>
    %72 = arith.cmpi eq, %55, %71 : vector<128x128xi32>
    %cst = arith.constant 0.001953125 : f32
    %cst_22 = arith.constant 0.000000e+00 : f32
    %73 = vector.broadcast %cst : f32 to vector<128x128xf32>
    %74 = vector.broadcast %cst_22 : f32 to vector<128x128xf32>
    %75 = arith.select %72, %73, %74 : vector<128x128xi1>, vector<128x128xf32>
    %c31_i32 = arith.constant 31 : i32
    %76 = tpu.dynamic_rotate %0 by %c31_i32 dim 0 : vector<32x128xf32>, i32 -> vector<32x128xf32>
    %cst_23 = arith.constant 0.000000e+00 : f32
    %77 = vector.broadcast %cst_23 : f32 to vector<32x128xf32>
    %78 = arith.select %37, %76, %77 : vector<32x128xi1>, vector<32x128xf32>
    %c1_i32_24 = arith.constant 1 : i32
    %79 = tpu.dynamic_rotate %0 by %c1_i32_24 dim 0 : vector<32x128xf32>, i32 -> vector<32x128xf32>
    %cst_25 = arith.constant 0.000000e+00 : f32
    %80 = vector.broadcast %cst_25 : f32 to vector<32x128xf32>
    %81 = arith.select %19, %79, %80 : vector<32x128xi1>, vector<32x128xf32>
    %82 = tpu.concatenate %81, %0, %78 in 1 : vector<32x128xf32>, vector<32x128xf32>, vector<32x128xf32> -> vector<32x384xf32>
    %83 = arith.truncf %82 : vector<32x384xf32> to vector<32x384xbf16>
    %c0_26 = arith.constant 0 : index
    %c0_27 = arith.constant 0 : index
    %84 = vector.load %arg1[%c0_26, %c0_27] : memref<384x128xbf16, #tpu.memory_space<vmem>>, vector<384x128xbf16>
    %cst_28 = arith.constant dense<0.000000e+00> : vector<32x128xf32>
    %85 = tpu.matmul %83, %84, %cst_28 {dimension_numbers = #tpu.dot_dimension_numbers<[1], [0], [0], [1], [0, 0, 1, 1], [], []>} : vector<32x384xbf16>, vector<384x128xbf16>, vector<32x128xf32> -> vector<32x128xf32>
    %cst_29 = arith.constant dense<0.000000e+00> : vector<128xf32>
    %86 = vector.multi_reduction <add>, %85, %cst_29 [0] : vector<32x128xf32> to vector<128xf32>
    %87 = vector.shape_cast %86 : vector<128xf32> to vector<1x128xf32>
    %88 = arith.mulf %85, %85 : vector<32x128xf32>
    %cst_30 = arith.constant dense<0.000000e+00> : vector<128xf32>
    %89 = vector.multi_reduction <add>, %88, %cst_30 [0] : vector<32x128xf32> to vector<128xf32>
    %90 = vector.shape_cast %89 : vector<128xf32> to vector<1x128xf32>
    %91 = tpu.concatenate %87, %90 in 0 : vector<1x128xf32>, vector<1x128xf32> -> vector<2x128xf32>
    %cst_31 = arith.constant dense<0.000000e+00> : vector<2x128xf32>
    %92 = tpu.matmul %91, %75, %cst_31 {dimension_numbers = #tpu.dot_dimension_numbers<[1], [0], [0], [1], [0, 0, 1, 1], [], []>} : vector<2x128xf32>, vector<128x128xf32>, vector<2x128xf32> -> vector<2x128xf32>
    %93 = vector.extract_strided_slice %92 {offsets = [0, 0], sizes = [1, 128], strides = [1, 1]} : vector<2x128xf32> to vector<1x128xf32>
    %94 = vector.extract_strided_slice %92 {offsets = [1, 0], sizes = [1, 128], strides = [1, 1]} : vector<2x128xf32> to vector<1x128xf32>
    %95 = arith.mulf %93, %93 : vector<1x128xf32>
    %96 = arith.subf %94, %95 : vector<1x128xf32>
    %cst_32 = arith.constant 0.000000e+00 : f32
    %97 = vector.broadcast %cst_32 : f32 to vector<1x128xf32>
    %98 = arith.maximumf %96, %97 : vector<1x128xf32>
    %c0_33 = arith.constant 0 : index
    %c0_34 = arith.constant 0 : index
    %99 = vector.load %arg4[%c0_33, %c0_34] : memref<3x128xf32, #tpu.memory_space<vmem>>, vector<1x128xf32>
    %cst_35 = arith.constant 9.99999974E-6 : f32
    %100 = vector.broadcast %cst_35 : f32 to vector<1x128xf32>
    %101 = arith.addf %98, %100 : vector<1x128xf32>
    %102 = math.rsqrt %101 : vector<1x128xf32>
    %103 = arith.mulf %99, %102 : vector<1x128xf32>
    %c0_36 = arith.constant 0 : index
    %c0_37 = arith.constant 0 : index
    %104 = vector.load %arg5[%c0_36, %c0_37] : memref<3x128xf32, #tpu.memory_space<vmem>>, vector<1x128xf32>
    %105 = arith.mulf %93, %103 : vector<1x128xf32>
    %106 = arith.subf %104, %105 : vector<1x128xf32>
    %107 = vector.broadcast %103 : vector<1x128xf32> to vector<32x128xf32>
    %108 = arith.mulf %85, %107 : vector<32x128xf32>
    %109 = vector.broadcast %106 : vector<1x128xf32> to vector<32x128xf32>
    %110 = arith.addf %108, %109 : vector<32x128xf32>
    %cst_38 = arith.constant 0.000000e+00 : f32
    %111 = vector.broadcast %cst_38 : f32 to vector<32x128xf32>
    %112 = arith.cmpf ogt, %110, %111 : vector<32x128xf32>
    %cst_39 = arith.constant 1.000000e-01 : f32
    %113 = vector.broadcast %cst_39 : f32 to vector<32x128xf32>
    %114 = arith.mulf %113, %110 : vector<32x128xf32>
    %115 = arith.select %112, %110, %114 : vector<32x128xi1>, vector<32x128xf32>
    %c31_i32_40 = arith.constant 31 : i32
    %116 = tpu.dynamic_rotate %115 by %c31_i32_40 dim 0 : vector<32x128xf32>, i32 -> vector<32x128xf32>
    %cst_41 = arith.constant 0.000000e+00 : f32
    %117 = vector.broadcast %cst_41 : f32 to vector<32x128xf32>
    %118 = arith.select %37, %116, %117 : vector<32x128xi1>, vector<32x128xf32>
    %c1_i32_42 = arith.constant 1 : i32
    %119 = tpu.dynamic_rotate %115 by %c1_i32_42 dim 0 : vector<32x128xf32>, i32 -> vector<32x128xf32>
    %cst_43 = arith.constant 0.000000e+00 : f32
    %120 = vector.broadcast %cst_43 : f32 to vector<32x128xf32>
    %121 = arith.select %19, %119, %120 : vector<32x128xi1>, vector<32x128xf32>
    %122 = tpu.concatenate %121, %115, %118 in 1 : vector<32x128xf32>, vector<32x128xf32>, vector<32x128xf32> -> vector<32x384xf32>
    %123 = arith.truncf %122 : vector<32x384xf32> to vector<32x384xbf16>
    %c0_44 = arith.constant 0 : index
    %c0_45 = arith.constant 0 : index
    %124 = vector.load %arg2[%c0_44, %c0_45] : memref<384x128xbf16, #tpu.memory_space<vmem>>, vector<384x128xbf16>
    %cst_46 = arith.constant dense<0.000000e+00> : vector<32x128xf32>
    %125 = tpu.matmul %123, %124, %cst_46 {dimension_numbers = #tpu.dot_dimension_numbers<[1], [0], [0], [1], [0, 0, 1, 1], [], []>} : vector<32x384xbf16>, vector<384x128xbf16>, vector<32x128xf32> -> vector<32x128xf32>
    %cst_47 = arith.constant dense<0.000000e+00> : vector<128xf32>
    %126 = vector.multi_reduction <add>, %125, %cst_47 [0] : vector<32x128xf32> to vector<128xf32>
    %127 = vector.shape_cast %126 : vector<128xf32> to vector<1x128xf32>
    %128 = arith.mulf %125, %125 : vector<32x128xf32>
    %cst_48 = arith.constant dense<0.000000e+00> : vector<128xf32>
    %129 = vector.multi_reduction <add>, %128, %cst_48 [0] : vector<32x128xf32> to vector<128xf32>
    %130 = vector.shape_cast %129 : vector<128xf32> to vector<1x128xf32>
    %131 = tpu.concatenate %127, %130 in 0 : vector<1x128xf32>, vector<1x128xf32> -> vector<2x128xf32>
    %cst_49 = arith.constant dense<0.000000e+00> : vector<2x128xf32>
    %132 = tpu.matmul %131, %75, %cst_49 {dimension_numbers = #tpu.dot_dimension_numbers<[1], [0], [0], [1], [0, 0, 1, 1], [], []>} : vector<2x128xf32>, vector<128x128xf32>, vector<2x128xf32> -> vector<2x128xf32>
    %133 = vector.extract_strided_slice %132 {offsets = [0, 0], sizes = [1, 128], strides = [1, 1]} : vector<2x128xf32> to vector<1x128xf32>
    %134 = vector.extract_strided_slice %132 {offsets = [1, 0], sizes = [1, 128], strides = [1, 1]} : vector<2x128xf32> to vector<1x128xf32>
    %135 = arith.mulf %133, %133 : vector<1x128xf32>
    %136 = arith.subf %134, %135 : vector<1x128xf32>
    %cst_50 = arith.constant 0.000000e+00 : f32
    %137 = vector.broadcast %cst_50 : f32 to vector<1x128xf32>
    %138 = arith.maximumf %136, %137 : vector<1x128xf32>
    %c1 = arith.constant 1 : index
    %c0_51 = arith.constant 0 : index
    %139 = vector.load %arg4[%c1, %c0_51] : memref<3x128xf32, #tpu.memory_space<vmem>>, vector<1x128xf32>
    %cst_52 = arith.constant 9.99999974E-6 : f32
    %140 = vector.broadcast %cst_52 : f32 to vector<1x128xf32>
    %141 = arith.addf %138, %140 : vector<1x128xf32>
    %142 = math.rsqrt %141 : vector<1x128xf32>
    %143 = arith.mulf %139, %142 : vector<1x128xf32>
    %c1_53 = arith.constant 1 : index
    %c0_54 = arith.constant 0 : index
    %144 = vector.load %arg5[%c1_53, %c0_54] : memref<3x128xf32, #tpu.memory_space<vmem>>, vector<1x128xf32>
    %145 = arith.mulf %133, %143 : vector<1x128xf32>
    %146 = arith.subf %144, %145 : vector<1x128xf32>
    %147 = vector.broadcast %143 : vector<1x128xf32> to vector<32x128xf32>
    %148 = arith.mulf %125, %147 : vector<32x128xf32>
    %149 = vector.broadcast %146 : vector<1x128xf32> to vector<32x128xf32>
    %150 = arith.addf %148, %149 : vector<32x128xf32>
    %cst_55 = arith.constant 0.000000e+00 : f32
    %151 = vector.broadcast %cst_55 : f32 to vector<32x128xf32>
    %152 = arith.cmpf ogt, %150, %151 : vector<32x128xf32>
    %cst_56 = arith.constant 1.000000e-01 : f32
    %153 = vector.broadcast %cst_56 : f32 to vector<32x128xf32>
    %154 = arith.mulf %153, %150 : vector<32x128xf32>
    %155 = arith.select %152, %150, %154 : vector<32x128xi1>, vector<32x128xf32>
    %c31_i32_57 = arith.constant 31 : i32
    %156 = tpu.dynamic_rotate %155 by %c31_i32_57 dim 0 : vector<32x128xf32>, i32 -> vector<32x128xf32>
    %cst_58 = arith.constant 0.000000e+00 : f32
    %157 = vector.broadcast %cst_58 : f32 to vector<32x128xf32>
    %158 = arith.select %37, %156, %157 : vector<32x128xi1>, vector<32x128xf32>
    %c1_i32_59 = arith.constant 1 : i32
    %159 = tpu.dynamic_rotate %155 by %c1_i32_59 dim 0 : vector<32x128xf32>, i32 -> vector<32x128xf32>
    %cst_60 = arith.constant 0.000000e+00 : f32
    %160 = vector.broadcast %cst_60 : f32 to vector<32x128xf32>
    %161 = arith.select %19, %159, %160 : vector<32x128xi1>, vector<32x128xf32>
    %162 = tpu.concatenate %161, %155, %158 in 1 : vector<32x128xf32>, vector<32x128xf32>, vector<32x128xf32> -> vector<32x384xf32>
    %163 = arith.truncf %162 : vector<32x384xf32> to vector<32x384xbf16>
    %c0_61 = arith.constant 0 : index
    %c0_62 = arith.constant 0 : index
    %164 = vector.load %arg3[%c0_61, %c0_62] : memref<384x128xbf16, #tpu.memory_space<vmem>>, vector<384x128xbf16>
    %cst_63 = arith.constant dense<0.000000e+00> : vector<32x128xf32>
    %165 = tpu.matmul %163, %164, %cst_63 {dimension_numbers = #tpu.dot_dimension_numbers<[1], [0], [0], [1], [0, 0, 1, 1], [], []>} : vector<32x384xbf16>, vector<384x128xbf16>, vector<32x128xf32> -> vector<32x128xf32>
    %cst_64 = arith.constant dense<0.000000e+00> : vector<128xf32>
    %166 = vector.multi_reduction <add>, %165, %cst_64 [0] : vector<32x128xf32> to vector<128xf32>
    %167 = vector.shape_cast %166 : vector<128xf32> to vector<1x128xf32>
    %168 = arith.mulf %165, %165 : vector<32x128xf32>
    %cst_65 = arith.constant dense<0.000000e+00> : vector<128xf32>
    %169 = vector.multi_reduction <add>, %168, %cst_65 [0] : vector<32x128xf32> to vector<128xf32>
    %170 = vector.shape_cast %169 : vector<128xf32> to vector<1x128xf32>
    %171 = tpu.concatenate %167, %170 in 0 : vector<1x128xf32>, vector<1x128xf32> -> vector<2x128xf32>
    %cst_66 = arith.constant dense<0.000000e+00> : vector<2x128xf32>
    %172 = tpu.matmul %171, %75, %cst_66 {dimension_numbers = #tpu.dot_dimension_numbers<[1], [0], [0], [1], [0, 0, 1, 1], [], []>} : vector<2x128xf32>, vector<128x128xf32>, vector<2x128xf32> -> vector<2x128xf32>
    %173 = vector.extract_strided_slice %172 {offsets = [0, 0], sizes = [1, 128], strides = [1, 1]} : vector<2x128xf32> to vector<1x128xf32>
    %174 = vector.extract_strided_slice %172 {offsets = [1, 0], sizes = [1, 128], strides = [1, 1]} : vector<2x128xf32> to vector<1x128xf32>
    %175 = arith.mulf %173, %173 : vector<1x128xf32>
    %176 = arith.subf %174, %175 : vector<1x128xf32>
    %cst_67 = arith.constant 0.000000e+00 : f32
    %177 = vector.broadcast %cst_67 : f32 to vector<1x128xf32>
    %178 = arith.maximumf %176, %177 : vector<1x128xf32>
    %c2 = arith.constant 2 : index
    %c0_68 = arith.constant 0 : index
    %179 = vector.load %arg4[%c2, %c0_68] : memref<3x128xf32, #tpu.memory_space<vmem>>, vector<1x128xf32>
    %cst_69 = arith.constant 9.99999974E-6 : f32
    %180 = vector.broadcast %cst_69 : f32 to vector<1x128xf32>
    %181 = arith.addf %178, %180 : vector<1x128xf32>
    %182 = math.rsqrt %181 : vector<1x128xf32>
    %183 = arith.mulf %179, %182 : vector<1x128xf32>
    %c2_70 = arith.constant 2 : index
    %c0_71 = arith.constant 0 : index
    %184 = vector.load %arg5[%c2_70, %c0_71] : memref<3x128xf32, #tpu.memory_space<vmem>>, vector<1x128xf32>
    %185 = arith.mulf %173, %183 : vector<1x128xf32>
    %186 = arith.subf %184, %185 : vector<1x128xf32>
    %187 = vector.broadcast %183 : vector<1x128xf32> to vector<32x128xf32>
    %188 = arith.mulf %165, %187 : vector<32x128xf32>
    %189 = vector.broadcast %186 : vector<1x128xf32> to vector<32x128xf32>
    %190 = arith.addf %188, %189 : vector<32x128xf32>
    %191 = arith.addf %190, %0 : vector<32x128xf32>
    %cst_72 = arith.constant 0.000000e+00 : f32
    %192 = vector.broadcast %cst_72 : f32 to vector<32x128xf32>
    %193 = arith.cmpf ogt, %191, %192 : vector<32x128xf32>
    %cst_73 = arith.constant 1.000000e-01 : f32
    %194 = vector.broadcast %cst_73 : f32 to vector<32x128xf32>
    %195 = arith.mulf %194, %191 : vector<32x128xf32>
    %196 = arith.select %193, %191, %195 : vector<32x128xi1>, vector<32x128xf32>
    %c0_74 = arith.constant 0 : index
    %c0_75 = arith.constant 0 : index
    %197 = vector.load %arg6[%c0_74, %c0_75] : memref<32x128xf32, #tpu.memory_space<vmem>>, vector<32x128xf32>
    tpu.vector_store %arg6[%c0_74, %c0_75], %196 {strides = array<i32>} : memref<32x128xf32, #tpu.memory_space<vmem>>, vector<32x128xf32>,
    return
  }
}

</mosaic_0001>

<llo_original>
// kernel: tpu_custom_call.1
$region0: #{tpu_custom_call.1}
  #allocation0 [shape = 'u32[]', space=smem, size = 0x4, offset = 0x4, fixed_abs, tag = 'smem constant byte address 0x4 - core index']
  #allocation1 [shape = 'u32[144,128]{1,0:T(1,128)}', space=vmem, size = 0x12000, scoped, tag = 'internal scratch']
  %s0 = inlined_call_operand.hbm [shape: f32[32,128], index: 0, kind: input, shape index: {}]
  %s1 = inlined_call_operand.hbm [shape: bf16[384,128], index: 1, kind: input, shape index: {}]
  %s2 = inlined_call_operand.hbm [shape: bf16[384,128], index: 2, kind: input, shape index: {}]
  %s3 = inlined_call_operand.hbm [shape: bf16[384,128], index: 3, kind: input, shape index: {}]
  %s4 = inlined_call_operand.vmem [shape: f32[3,128], index: 4, kind: input, shape index: {}]
  %s5 = inlined_call_operand.vmem [shape: f32[3,128], index: 5, kind: input, shape index: {}]
  %s6 = inlined_call_operand.hbm [shape: f32[32,128], index: 6, kind: output, shape index: {}]
  %s7 = sld [smem:[#allocation0]]
  $region50: #{tpu_custom_call.1} parent=0
    _
  %s9 = ssub.s32 1, %s7
  %s10 = scalar_select 0, %s9, %s7
  $region1: #{tpu_custom_call.1} parent=0
    #allocation2 [shape = 'u8[16384]{0}', space=vmem, size = 0x4000, scoped, tag = 'input window, operand 0, single buffered']
    #allocation3 [shape = 's32[1]{0}', space=sflag, size = 0x4, scoped, tag = 'scoped memory for tpu_custom_call.1']
    #allocation4 [shape = 's32[1]{0}', space=sflag, size = 0x4, scoped, tag = 'scoped memory for tpu_custom_call.1']
    #allocation5 [shape = 'u8[98304]{0}', space=vmem, size = 0x18000, scoped, tag = 'input window, operand 1, single buffered']
    #allocation6 [shape = 's32[1]{0}', space=sflag, size = 0x4, scoped, tag = 'scoped memory for tpu_custom_call.1']
    #allocation7 [shape = 'u8[98304]{0}', space=vmem, size = 0x18000, scoped, tag = 'input window, operand 2, single buffered']
    #allocation8 [shape = 'u8[98304]{0}', space=vmem, size = 0x18000, scoped, tag = 'input window, operand 3, single buffered']
    #allocation9 [shape = 's32[1]{0}', space=sflag, size = 0x4, scoped, tag = 'scoped memory for tpu_custom_call.1']
    #allocation10 [shape = 'u8[16384]{0}', space=vmem, size = 0x4000, scoped, tag = 'output window, operand 0, single buffered']
    %11 = vsyncpa [#allocation3], 0
    %12 = vsyncpa [#allocation6], 0
    %13 = vsyncpa [#allocation9], 0
    %14 = vsyncpa [#allocation4], 0
    // Predicated region
    $region2: #{tpu_custom_call.1} parent=1 // pred_check
      _
    $region3: #{tpu_custom_call.1} parent=1 // pred_check_branch
      %16 = sbr.rel (0) target = $region5
    $region4: #{tpu_custom_call.1} parent=1 // pred_region
      %s18 = ssub.s32 512, 512
      %19 = vsyncadd [#allocation3], %s18
      %s20 = sshll.u32 [#allocation2], 4
      %s21 = int_to_ptr.vmem [resolvable:$true] %s20
      %26 = dma.hbm_to_vmem [thread:$0]  %s0, 512, %s21, [#allocation3], 128, 128, 8
    $region5: #{tpu_custom_call.1} parent=1 // pred_fallthru
      _
    // Predicated region
    $region6: #{tpu_custom_call.1} parent=1 // pred_check
      _
    $region7: #{tpu_custom_call.1} parent=1 // pred_check_branch
      %28 = sbr.rel (0) target = $region9
    $region8: #{tpu_custom_call.1} parent=1 // pred_region
      %s30 = ssub.s32 3072, 3072
      %31 = vsyncadd [#allocation6], %s30
      %s32 = sshll.u32 [#allocation5], 4
      %s33 = int_to_ptr.vmem [resolvable:$true] %s32
      %38 = dma.hbm_to_vmem [thread:$0]  %s1, 3072, %s33, [#allocation6], 64, 64, 4
    $region9: #{tpu_custom_call.1} parent=1 // pred_fallthru
      _
    // Predicated region
    $region10: #{tpu_custom_call.1} parent=1 // pred_check
      _
    $region11: #{tpu_custom_call.1} parent=1 // pred_check_branch
      %40 = sbr.rel (0) target = $region13
    $region12: #{tpu_custom_call.1} parent=1 // pred_region
      %s42 = ssub.s32 3072, 3072
      %43 = vsyncadd [#allocation6], %s42
      %s44 = sshll.u32 [#allocation7], 4
      %s45 = int_to_ptr.vmem [resolvable:$true] %s44
      %50 = dma.hbm_to_vmem [thread:$0]  %s2, 3072, %s45, [#allocation6], 64, 64, 4
    $region13: #{tpu_custom_call.1} parent=1 // pred_fallthru
      _
    // Predicated region
    $region14: #{tpu_custom_call.1} parent=1 // pred_check
      _
    $region15: #{tpu_custom_call.1} parent=1 // pred_check_branch
      %52 = sbr.rel (0) target = $region17
    $region16: #{tpu_custom_call.1} parent=1 // pred_region
      %s54 = ssub.s32 3072, 3072
      %55 = vsyncadd [#allocation9], %s54
      %s56 = sshll.u32 [#allocation8], 4
      %s57 = int_to_ptr.vmem [resolvable:$true] %s56
      %62 = dma.hbm_to_vmem [thread:$0]  %s3, 3072, %s57, [#allocation9], 64, 64, 4
    $region17: #{tpu_custom_call.1} parent=1 // pred_fallthru
      _
    // Predicated region
    $region18: #{tpu_custom_call.1} parent=1 // pred_check
      _
    $region19: #{tpu_custom_call.1} parent=1 // pred_check_branch
      %64 = sbr.rel (0) target = $region21
    $region20: #{tpu_custom_call.1} parent=1 // pred_region
      _
    $region21: #{tpu_custom_call.1} parent=1 // pred_fallthru
      _
    // Predicated region
    $region22: #{tpu_custom_call.1} parent=1 // pred_check
      _
    $region23: #{tpu_custom_call.1} parent=1 // pred_check_branch
      %66 = sbr.rel (0) target = $region25
    $region24: #{tpu_custom_call.1} parent=1 // pred_region
      _
    $region25: #{tpu_custom_call.1} parent=1 // pred_fallthru
      _
    // Predicated region
    $region26: #{tpu_custom_call.1} parent=1 // pred_check
      _
    $region27: #{tpu_custom_call.1} parent=1 // pred_check_branch
      %68 = sbr.rel (0) target = $region29
    $region28: #{tpu_custom_call.1} parent=1 // pred_region
      %69 = dma.done [#allocation3], 512
    $region29: #{tpu_custom_call.1} parent=1 // pred_fallthru
      _
    // Predicated region
    $region30: #{tpu_custom_call.1} parent=1 // pred_check
      _
    $region31: #{tpu_custom_call.1} parent=1 // pred_check_branch
      %71 = sbr.rel (0) target = $region33
    $region32: #{tpu_custom_call.1} parent=1 // pred_region
      %72 = dma.done [#allocation6], 3072
    $region33: #{tpu_custom_call.1} parent=1 // pred_fallthru
      _
    // Predicated region
    $region34: #{tpu_custom_call.1} parent=1 // pred_check
      _
    $region35: #{tpu_custom_call.1} parent=1 // pred_check_branch
      %74 = sbr.rel (0) target = $region37
    $region36: #{tpu_custom_call.1} parent=1 // pred_region
      %75 = dma.done [#allocation6], 3072
    $region37: #{tpu_custom_call.1} parent=1 // pred_fallthru
      _
    // Predicated region
    $region38: #{tpu_custom_call.1} parent=1 // pred_check
      _
    $region39: #{tpu_custom_call.1} parent=1 // pred_check_branch
      %77 = sbr.rel (0) target = $region41
    $region40: #{tpu_custom_call.1} parent=1 // pred_region
      %78 = dma.done [#allocation9], 3072
    $region41: #{tpu_custom_call.1} parent=1 // pred_fallthru
      _
    %v80 = vld [vmem:[#allocation2] sm:$0xff]
    %v81 = vld [vmem:[#allocation2 + $0x8] sm:$0xff]
    %v82 = vld [vmem:[#allocation2 + $0x10] sm:$0xff]
    %v83 = vld [vmem:[#allocation2 + $0x18] sm:$0xff]
    %v84 = vlaneseq
    %v85 = vshrl.u32 %v84, 7
    %v86 = vadd.s32 %v85, 8
    %v87 = vadd.s32 %v85, 16
    %v88 = vadd.s32 %v85, 24
    %vm89 = vcmp.lt.s32.totalorder %v85, 0
    %v90 = vsub.s32 0, %v85
    %v91 = vsel %vm89, %v90, %v85
    %v92 = vshrl.u32 %v91, 4
    %v93 = vand.u32 %v91, 15
    %v94 = vsub.s32 0, %v93
    %v95 = vsel %vm89, %v94, %v93
    %vm96 = vcmp.lt.s32.totalorder %v86, 0
    %v97 = vsub.s32 0, %v86
    %v98 = vsel %vm96, %v97, %v86
    %v99 = vshrl.u32 %v98, 4
    %v100 = vand.u32 %v98, 15
    %v101 = vsub.s32 0, %v100
    %v102 = vsel %vm96, %v101, %v100
    %vm103 = vcmp.lt.s32.totalorder %v87, 0
    %v104 = vsub.s32 0, %v87
    %v105 = vsel %vm103, %v104, %v87
    %v106 = vshrl.u32 %v105, 4
    %v107 = vand.u32 %v105, 15
    %v108 = vsub.s32 0, %v107
    %v109 = vsel %vm103, %v108, %v107
    %vm110 = vcmp.lt.s32.totalorder %v88, 0
    %v111 = vsub.s32 0, %v88
    %v112 = vsel %vm110, %v111, %v88
    %v113 = vshrl.u32 %v112, 4
    %v114 = vand.u32 %v112, 15
    %v115 = vsub.s32 0, %v114
    %v116 = vsel %vm110, %v115, %v114
    %vm117 = vcmp.ne.s32.totalorder %v95, 0
    %vm118 = vcmp.ne.s32.totalorder %v102, 0
    %vm119 = vcmp.ne.s32.totalorder %v109, 0
    %vm120 = vcmp.ne.s32.totalorder %v116, 0
    %vm121 = vcmp.lt.s32.totalorder %v95, 0
    %vm122 = vcmp.lt.s32.totalorder %v102, 0
    %vm123 = vcmp.lt.s32.totalorder %v109, 0
    %vm124 = vcmp.lt.s32.totalorder %v116, 0
    %vm125 = vmand %vm121, %vm117
    %vm126 = vmand %vm122, %vm118
    %vm127 = vmand %vm123, %vm119
    %vm128 = vmand %vm124, %vm120
    %v129 = vadd.s32 %v95, 16
    %v130 = vadd.s32 %v102, 16
    %v131 = vadd.s32 %v109, 16
    %v132 = vadd.s32 %v116, 16
    %v133 = vsel %vm125, %v129, %v95
    %v134 = vsel %vm126, %v130, %v102
    %v135 = vsel %vm127, %v131, %v109
    %v136 = vsel %vm128, %v132, %v116
    %vm137 = vcmp.ne.s32.totalorder %v133, 0
    %vm138 = vcmp.ne.s32.totalorder %v134, 0
    %vm139 = vcmp.ne.s32.totalorder %v135, 0
    %vm140 = vcmp.ne.s32.totalorder %v136, 0
    %vm141 = vcmp.ne.s32.totalorder %v133, 15
    %vm142 = vcmp.ne.s32.totalorder %v134, 15
    %vm143 = vcmp.ne.s32.totalorder %v135, 15
    %vm144 = vcmp.ne.s32.totalorder %v136, 15
    %v145 = vadd.s32 %v85, 32
    %v146 = vadd.s32 %v85, 40
    %v147 = vadd.s32 %v85, 48
    %v148 = vadd.s32 %v85, 56
    %v149 = vadd.s32 %v85, 64
    %v150 = vadd.s32 %v85, 72
    %v151 = vadd.s32 %v85, 80
    %v152 = vadd.s32 %v85, 88
    %v153 = vadd.s32 %v85, 96
    %v154 = vadd.s32 %v85, 104
    %v155 = vadd.s32 %v85, 112
    %v156 = vadd.s32 %v85, 120
    %v157 = vlaneseq
    %v158 = vand.u32 %v157, 127
    %vm159 = vcmp.lt.s32.totalorder %v85, 0
    %v160 = vsub.s32 0, %v85
    %v161 = vsel %vm159, %v160, %v85
    %v162 = vshrl.u32 %v161, 3
    %v163 = vand.u32 %v161, 7
    %v164 = vsub.s32 0, %v163
    %v165 = vsel %vm159, %v164, %v163
    %vm166 = vcmp.lt.s32.totalorder %v86, 0
    %v167 = vsub.s32 0, %v86
    %v168 = vsel %vm166, %v167, %v86
    %v169 = vshrl.u32 %v168, 3
    %v170 = vand.u32 %v168, 7
    %v171 = vsub.s32 0, %v170
    %v172 = vsel %vm166, %v171, %v170
    %vm173 = vcmp.lt.s32.totalorder %v87, 0
    %v174 = vsub.s32 0, %v87
    %v175 = vsel %vm173, %v174, %v87
    %v176 = vshrl.u32 %v175, 3
    %v177 = vand.u32 %v175, 7
    %v178 = vsub.s32 0, %v177
    %v179 = vsel %vm173, %v178, %v177
    %vm180 = vcmp.lt.s32.totalorder %v88, 0
    %v181 = vsub.s32 0, %v88
    %v182 = vsel %vm180, %v181, %v88
    %v183 = vshrl.u32 %v182, 3
    %v184 = vand.u32 %v182, 7
    %v185 = vsub.s32 0, %v184
    %v186 = vsel %vm180, %v185, %v184
    %vm187 = vcmp.lt.s32.totalorder %v145, 0
    %v188 = vsub.s32 0, %v145
    %v189 = vsel %vm187, %v188, %v145
    %v190 = vshrl.u32 %v189, 3
    %v191 = vand.u32 %v189, 7
    %v192 = vsub.s32 0, %v191
    %v193 = vsel %vm187, %v192, %v191
    %vm194 = vcmp.lt.s32.totalorder %v146, 0
    %v195 = vsub.s32 0, %v146
    %v196 = vsel %vm194, %v195, %v146
    %v197 = vshrl.u32 %v196, 3
    %v198 = vand.u32 %v196, 7
    %v199 = vsub.s32 0, %v198
    %v200 = vsel %vm194, %v199, %v198
    %vm201 = vcmp.lt.s32.totalorder %v147, 0
    %v202 = vsub.s32 0, %v147
    %v203 = vsel %vm201, %v202, %v147
    %v204 = vshrl.u32 %v203, 3
    %v205 = vand.u32 %v203, 7
    %v206 = vsub.s32 0, %v205
    %v207 = vsel %vm201, %v206, %v205
    %vm208 = vcmp.lt.s32.totalorder %v148, 0
    %v209 = vsub.s32 0, %v148
    %v210 = vsel %vm208, %v209, %v148
    %v211 = vshrl.u32 %v210, 3
    %v212 = vand.u32 %v210, 7
    %v213 = vsub.s32 0, %v212
    %v214 = vsel %vm208, %v213, %v212
    %vm215 = vcmp.lt.s32.totalorder %v149, 0
    %v216 = vsub.s32 0, %v149
    %v217 = vsel %vm215, %v216, %v149
    %v218 = vshrl.u32 %v217, 3
    %v219 = vand.u32 %v217, 7
    %v220 = vsub.s32 0, %v219
    %v221 = vsel %vm215, %v220, %v219
    %vm222 = vcmp.lt.s32.totalorder %v150, 0
    %v223 = vsub.s32 0, %v150
    %v224 = vsel %vm222, %v223, %v150
    %v225 = vshrl.u32 %v224, 3
    %v226 = vand.u32 %v224, 7
    %v227 = vsub.s32 0, %v226
    %v228 = vsel %vm222, %v227, %v226
    %vm229 = vcmp.lt.s32.totalorder %v151, 0
    %v230 = vsub.s32 0, %v151
    %v231 = vsel %vm229, %v230, %v151
    %v232 = vshrl.u32 %v231, 3
    %v233 = vand.u32 %v231, 7
    %v234 = vsub.s32 0, %v233
    %v235 = vsel %vm229, %v234, %v233
    %vm236 = vcmp.lt.s32.totalorder %v152, 0
    %v237 = vsub.s32 0, %v152
    %v238 = vsel %vm236, %v237, %v152
    %v239 = vshrl.u32 %v238, 3
    %v240 = vand.u32 %v238, 7
    %v241 = vsub.s32 0, %v240
    %v242 = vsel %vm236, %v241, %v240
    %vm243 = vcmp.lt.s32.totalorder %v153, 0
    %v244 = vsub.s32 0, %v153
    %v245 = vsel %vm243, %v244, %v153
    %v246 = vshrl.u32 %v245, 3
    %v247 = vand.u32 %v245, 7
    %v248 = vsub.s32 0, %v247
    %v249 = vsel %vm243, %v248, %v247
    %vm250 = vcmp.lt.s32.totalorder %v154, 0
    %v251 = vsub.s32 0, %v154
    %v252 = vsel %vm250, %v251, %v154
    %v253 = vshrl.u32 %v252, 3
    %v254 = vand.u32 %v252, 7
    %v255 = vsub.s32 0, %v254
    %v256 = vsel %vm250, %v255, %v254
    %vm257 = vcmp.lt.s32.totalorder %v155, 0
    %v258 = vsub.s32 0, %v155
    %v259 = vsel %vm257, %v258, %v155
    %v260 = vshrl.u32 %v259, 3
    %v261 = vand.u32 %v259, 7
    %v262 = vsub.s32 0, %v261
    %v263 = vsel %vm257, %v262, %v261
    %vm264 = vcmp.lt.s32.totalorder %v156, 0
    %v265 = vsub.s32 0, %v156
    %v266 = vsel %vm264, %v265, %v156
    %v267 = vshrl.u32 %v266, 3
    %v268 = vand.u32 %v266, 7
    %v269 = vsub.s32 0, %v268
    %v270 = vsel %vm264, %v269, %v268
    %vm271 = vcmp.ne.s32.totalorder %v165, 0
    %vm272 = vcmp.ne.s32.totalorder %v172, 0
    %vm273 = vcmp.ne.s32.totalorder %v179, 0
    %vm274 = vcmp.ne.s32.totalorder %v186, 0
    %vm275 = vcmp.ne.s32.totalorder %v193, 0
    %vm276 = vcmp.ne.s32.totalorder %v200, 0
    %vm277 = vcmp.ne.s32.totalorder %v207, 0
    %vm278 = vcmp.ne.s32.totalorder %v214, 0
    %vm279 = vcmp.ne.s32.totalorder %v221, 0
    %vm280 = vcmp.ne.s32.totalorder %v228, 0
    %vm281 = vcmp.ne.s32.totalorder %v235, 0
    %vm282 = vcmp.ne.s32.totalorder %v242, 0
    %vm283 = vcmp.ne.s32.totalorder %v249, 0
    %vm284 = vcmp.ne.s32.totalorder %v256, 0
    %vm285 = vcmp.ne.s32.totalorder %v263, 0
    %vm286 = vcmp.ne.s32.totalorder %v270, 0
    %vm287 = vcmp.lt.s32.totalorder %v165, 0
    %vm288 = vcmp.lt.s32.totalorder %v172, 0
    %vm289 = vcmp.lt.s32.totalorder %v179, 0
    %vm290 = vcmp.lt.s32.totalorder %v186, 0
    %vm291 = vcmp.lt.s32.totalorder %v193, 0
    %vm292 = vcmp.lt.s32.totalorder %v200, 0
    %vm293 = vcmp.lt.s32.totalorder %v207, 0
    %vm294 = vcmp.lt.s32.totalorder %v214, 0
    %vm295 = vcmp.lt.s32.totalorder %v221, 0
    %vm296 = vcmp.lt.s32.totalorder %v228, 0
    %vm297 = vcmp.lt.s32.totalorder %v235, 0
    %vm298 = vcmp.lt.s32.totalorder %v242, 0
    %vm299 = vcmp.lt.s32.totalorder %v249, 0
    %vm300 = vcmp.lt.s32.totalorder %v256, 0
    %vm301 = vcmp.lt.s32.totalorder %v263, 0
    %vm302 = vcmp.lt.s32.totalorder %v270, 0
    %vm303 = vmand %vm287, %vm271
    %vm304 = vmand %vm288, %vm272
    %vm305 = vmand %vm289, %vm273
    %vm306 = vmand %vm290, %vm274
    %vm307 = vmand %vm291, %vm275
    %vm308 = vmand %vm292, %vm276
    %vm309 = vmand %vm293, %vm277
    %vm310 = vmand %vm294, %vm278
    %vm311 = vmand %vm295, %vm279
    %vm312 = vmand %vm296, %vm280
    %vm313 = vmand %vm297, %vm281
    %vm314 = vmand %vm298, %vm282
    %vm315 = vmand %vm299, %vm283
    %vm316 = vmand %vm300, %vm284
    %vm317 = vmand %vm301, %vm285
    %vm318 = vmand %vm302, %vm286
    %v319 = vadd.s32 %v165, 8
    %v320 = vadd.s32 %v172, 8
    %v321 = vadd.s32 %v179, 8
    %v322 = vadd.s32 %v186, 8
    %v323 = vadd.s32 %v193, 8
    %v324 = vadd.s32 %v200, 8
    %v325 = vadd.s32 %v207, 8
    %v326 = vadd.s32 %v214, 8
    %v327 = vadd.s32 %v221, 8
    %v328 = vadd.s32 %v228, 8
    %v329 = vadd.s32 %v235, 8
    %v330 = vadd.s32 %v242, 8
    %v331 = vadd.s32 %v249, 8
    %v332 = vadd.s32 %v256, 8
    %v333 = vadd.s32 %v263, 8
    %v334 = vadd.s32 %v270, 8
    %v335 = vsel %vm303, %v319, %v165
    %v336 = vsel %vm304, %v320, %v172
    %v337 = vsel %vm305, %v321, %v179
    %v338 = vsel %vm306, %v322, %v186
    %v339 = vsel %vm307, %v323, %v193
    %v340 = vsel %vm308, %v324, %v200
    %v341 = vsel %vm309, %v325, %v207
    %v342 = vsel %vm310, %v326, %v214
    %v343 = vsel %vm311, %v327, %v221
    %v344 = vsel %vm312, %v328, %v228
    %v345 = vsel %vm313, %v329, %v235
    %v346 = vsel %vm314, %v330, %v242
    %v347 = vsel %vm315, %v331, %v249
    %v348 = vsel %vm316, %v332, %v256
    %v349 = vsel %vm317, %v333, %v263
    %v350 = vsel %vm318, %v334, %v270
    %vm351 = vcmp.lt.s32.totalorder %v158, 0
    %v352 = vsub.s32 0, %v158
    %v353 = vsel %vm351, %v352, %v158
    %v354 = vshrl.u32 %v353, 3
    %v355 = vand.u32 %v353, 7
    %v356 = vsub.s32 0, %v355
    %v357 = vsel %vm351, %v356, %v355
    %vm358 = vcmp.ne.s32.totalorder %v357, 0
    %vm359 = vcmp.lt.s32.totalorder %v357, 0
    %vm360 = vmand %vm359, %vm358
    %v361 = vadd.s32 %v357, 8
    %v362 = vsel %vm360, %v361, %v357
    %vm363 = vcmp.eq.s32.totalorder %v335, %v362
    %vm364 = vcmp.eq.s32.totalorder %v336, %v362
    %vm365 = vcmp.eq.s32.totalorder %v337, %v362
    %vm366 = vcmp.eq.s32.totalorder %v338, %v362
    %vm367 = vcmp.eq.s32.totalorder %v339, %v362
    %vm368 = vcmp.eq.s32.totalorder %v340, %v362
    %vm369 = vcmp.eq.s32.totalorder %v341, %v362
    %vm370 = vcmp.eq.s32.totalorder %v342, %v362
    %vm371 = vcmp.eq.s32.totalorder %v343, %v362
    %vm372 = vcmp.eq.s32.totalorder %v344, %v362
    %vm373 = vcmp.eq.s32.totalorder %v345, %v362
    %vm374 = vcmp.eq.s32.totalorder %v346, %v362
    %vm375 = vcmp.eq.s32.totalorder %v347, %v362
    %vm376 = vcmp.eq.s32.totalorder %v348, %v362
    %vm377 = vcmp.eq.s32.totalorder %v349, %v362
    %vm378 = vcmp.eq.s32.totalorder %v350, %v362
    %v379 = vsel %vm363, 0.001953125, 0.0
    %v380 = vsel %vm364, 0.001953125, 0.0
    %v381 = vsel %vm365, 0.001953125, 0.0
    %v382 = vsel %vm366, 0.001953125, 0.0
    %v383 = vsel %vm367, 0.001953125, 0.0
    %v384 = vsel %vm368, 0.001953125, 0.0
    %v385 = vsel %vm369, 0.001953125, 0.0
    %v386 = vsel %vm370, 0.001953125, 0.0
    %v387 = vsel %vm371, 0.001953125, 0.0
    %v388 = vsel %vm372, 0.001953125, 0.0
    %v389 = vsel %vm373, 0.001953125, 0.0
    %v390 = vsel %vm374, 0.001953125, 0.0
    %v391 = vsel %vm375, 0.001953125, 0.0
    %v392 = vsel %vm376, 0.001953125, 0.0
    %v393 = vsel %vm377, 0.001953125, 0.0
    %v394 = vsel %vm378, 0.001953125, 0.0
    %v395 = vrot.slane %v80, 1
    %v396 = vrot.slane %v81, 1
    %v397 = vrot.slane %v82, 1
    %v398 = vrot.slane %v83, 1
    %vm399 = vcmp.lt.s32.totalorder %v85, 7
    %v400 = vsel %vm399, %v397, %v398
    %v401 = vsel %vm399, %v396, %v397
    %v402 = vsel %vm399, %v395, %v396
    %v403 = vsel %vm399, %v398, %v395
    %v404 = vsel %vm141, %v402, 0.0
    %v405 = vsel %vm142, %v401, 0.0
    %v406 = vsel %vm143, %v400, 0.0
    %v407 = vsel %vm144, %v403, 0.0
    %v408 = vrot.slane %v80, 7
    %v409 = vrot.slane %v81, 7
    %v410 = vrot.slane %v82, 7
    %v411 = vrot.slane %v83, 7
    %vm412 = vcmp.lt.s32.totalorder %v85, 1
    %v413 = vsel %vm412, %v410, %v411
    %v414 = vsel %vm412, %v409, %v410
    %v415 = vsel %vm412, %v408, %v409
    %v416 = vsel %vm412, %v411, %v408
    %v417 = vsel %vm137, %v416, 0.0
    %v418 = vsel %vm138, %v415, 0.0
    %v419 = vsel %vm139, %v414, 0.0
    %v420 = vsel %vm140, %v413, 0.0
    %v421 = vpack.c.bf16 %v418, %v417
    %v422 = vpack.c.bf16 %v81, %v80
    %v423 = vpack.c.bf16 %v405, %v404
    %v424 = vpack.c.bf16 %v420, %v419
    %v425 = vpack.c.bf16 %v83, %v82
    %v426 = vpack.c.bf16 %v407, %v406
    %v427 = vld [vmem:[#allocation5] sm:$0xf]
    %v428 = vld [vmem:[#allocation5 + $0x4] sm:$0xf]
    %v429 = vld [vmem:[#allocation5 + $0x8] sm:$0xf]
    %v430 = vld [vmem:[#allocation5 + $0xc] sm:$0xf]
    %v431 = vld [vmem:[#allocation5 + $0x10] sm:$0xf]
    %v432 = vld [vmem:[#allocation5 + $0x14] sm:$0xf]
    %v433 = vld [vmem:[#allocation5 + $0x18] sm:$0xf]
    %v434 = vld [vmem:[#allocation5 + $0x1c] sm:$0xf]
    %v435 = vld [vmem:[#allocation5 + $0x20] sm:$0xf]
    %v436 = vld [vmem:[#allocation5 + $0x24] sm:$0xf]
    %v437 = vld [vmem:[#allocation5 + $0x28] sm:$0xf]
    %v438 = vld [vmem:[#allocation5 + $0x2c] sm:$0xf]
    %v439 = vld [vmem:[#allocation5 + $0x30] sm:$0xf]
    %v440 = vld [vmem:[#allocation5 + $0x34] sm:$0xf]
    %v441 = vld [vmem:[#allocation5 + $0x38] sm:$0xf]
    %v442 = vld [vmem:[#allocation5 + $0x3c] sm:$0xf]
    %v443 = vld [vmem:[#allocation5 + $0x40] sm:$0xf]
    %v444 = vld [vmem:[#allocation5 + $0x44] sm:$0xf]
    %v445 = vld [vmem:[#allocation5 + $0x48] sm:$0xf]
    %v446 = vld [vmem:[#allocation5 + $0x4c] sm:$0xf]
    %v447 = vld [vmem:[#allocation5 + $0x50] sm:$0xf]
    %v448 = vld [vmem:[#allocation5 + $0x54] sm:$0xf]
    %v449 = vld [vmem:[#allocation5 + $0x58] sm:$0xf]
    %v450 = vld [vmem:[#allocation5 + $0x5c] sm:$0xf]
    %v451 = vld [vmem:[#allocation5 + $0x60] sm:$0xf]
    %v452 = vld [vmem:[#allocation5 + $0x64] sm:$0xf]
    %v453 = vld [vmem:[#allocation5 + $0x68] sm:$0xf]
    %v454 = vld [vmem:[#allocation5 + $0x6c] sm:$0xf]
    %v455 = vld [vmem:[#allocation5 + $0x70] sm:$0xf]
    %v456 = vld [vmem:[#allocation5 + $0x74] sm:$0xf]
    %v457 = vld [vmem:[#allocation5 + $0x78] sm:$0xf]
    %v458 = vld [vmem:[#allocation5 + $0x7c] sm:$0xf]
    %v459 = vld [vmem:[#allocation5 + $0x80] sm:$0xf]
    %v460 = vld [vmem:[#allocation5 + $0x84] sm:$0xf]
    %v461 = vld [vmem:[#allocation5 + $0x88] sm:$0xf]
    %v462 = vld [vmem:[#allocation5 + $0x8c] sm:$0xf]
    %v463 = vld [vmem:[#allocation5 + $0x90] sm:$0xf]
    %v464 = vld [vmem:[#allocation5 + $0x94] sm:$0xf]
    %v465 = vld [vmem:[#allocation5 + $0x98] sm:$0xf]
    %v466 = vld [vmem:[#allocation5 + $0x9c] sm:$0xf]
    %v467 = vld [vmem:[#allocation5 + $0xa0] sm:$0xf]
    %v468 = vld [vmem:[#allocation5 + $0xa4] sm:$0xf]
    %v469 = vld [vmem:[#allocation5 + $0xa8] sm:$0xf]
    %v470 = vld [vmem:[#allocation5 + $0xac] sm:$0xf]
    %v471 = vld [vmem:[#allocation5 + $0xb0] sm:$0xf]
    %v472 = vld [vmem:[#allocation5 + $0xb4] sm:$0xf]
    %v473 = vld [vmem:[#allocation5 + $0xb8] sm:$0xf]
    %v474 = vld [vmem:[#allocation5 + $0xbc] sm:$0xf]
    %v523 = vunpack.c.l.b16 %v427
    %v524 = vunpack.c.l.b16 %v428
    %v525 = vunpack.c.l.b16 %v429
    %v526 = vunpack.c.l.b16 %v430
    %v527 = vunpack.c.l.b16 %v431
    %v528 = vunpack.c.l.b16 %v432
    %v529 = vunpack.c.l.b16 %v433
    %v530 = vunpack.c.l.b16 %v434
    %v531 = vunpack.c.l.b16 %v435
    %v532 = vunpack.c.l.b16 %v436
    %v533 = vunpack.c.l.b16 %v437
    %v534 = vunpack.c.l.b16 %v438
    %v535 = vunpack.c.l.b16 %v439
    %v536 = vunpack.c.l.b16 %v440
    %v537 = vunpack.c.l.b16 %v441
    %v538 = vunpack.c.l.b16 %v442
    %v539 = vunpack.c.l.b16 %v443
    %v540 = vunpack.c.l.b16 %v444
    %v541 = vunpack.c.l.b16 %v445
    %v542 = vunpack.c.l.b16 %v446
    %v543 = vunpack.c.l.b16 %v447
    %v544 = vunpack.c.l.b16 %v448
    %v545 = vunpack.c.l.b16 %v449
    %v546 = vunpack.c.l.b16 %v450
    %v547 = vunpack.c.l.b16 %v451
    %v548 = vunpack.c.l.b16 %v452
    %v549 = vunpack.c.l.b16 %v453
    %v550 = vunpack.c.l.b16 %v454
    %v551 = vunpack.c.l.b16 %v455
    %v552 = vunpack.c.l.b16 %v456
    %v553 = vunpack.c.l.b16 %v457
    %v554 = vunpack.c.l.b16 %v458
    %v555 = vunpack.c.l.b16 %v459
    %v556 = vunpack.c.l.b16 %v460
    %v557 = vunpack.c.l.b16 %v461
    %v558 = vunpack.c.l.b16 %v462
    %v559 = vunpack.c.l.b16 %v463
    %v560 = vunpack.c.l.b16 %v464
    %v561 = vunpack.c.l.b16 %v465
    %v562 = vunpack.c.l.b16 %v466
    %v563 = vunpack.c.l.b16 %v467
    %v564 = vunpack.c.l.b16 %v468
    %v565 = vunpack.c.l.b16 %v469
    %v566 = vunpack.c.l.b16 %v470
    %v567 = vunpack.c.l.b16 %v471
    %v568 = vunpack.c.l.b16 %v472
    %v569 = vunpack.c.l.b16 %v473
    %v570 = vunpack.c.l.b16 %v474
    %v571 = vpack.c.b16 %v524, %v523
    %v572 = vpack.c.b16 %v526, %v525
    %v573 = vpack.c.b16 %v528, %v527
    %v574 = vpack.c.b16 %v530, %v529
    %v575 = vpack.c.b16 %v532, %v531
    %v576 = vpack.c.b16 %v534, %v533
    %v577 = vpack.c.b16 %v536, %v535
    %v578 = vpack.c.b16 %v538, %v537
    %v579 = vpack.c.b16 %v540, %v539
    %v580 = vpack.c.b16 %v542, %v541
    %v581 = vpack.c.b16 %v544, %v543
    %v582 = vpack.c.b16 %v546, %v545
    %v583 = vpack.c.b16 %v548, %v547
    %v584 = vpack.c.b16 %v550, %v549
    %v585 = vpack.c.b16 %v552, %v551
    %v586 = vpack.c.b16 %v554, %v553
    %v587 = vpack.c.b16 %v556, %v555
    %v588 = vpack.c.b16 %v558, %v557
    %v589 = vpack.c.b16 %v560, %v559
    %v590 = vpack.c.b16 %v562, %v561
    %v591 = vpack.c.b16 %v564, %v563
    %v592 = vpack.c.b16 %v566, %v565
    %v593 = vpack.c.b16 %v568, %v567
    %v594 = vpack.c.b16 %v570, %v569
    %619 = vmatprep.subr.bf16.mxu0 0
    %620 = vmatpush1.bf16.msra.mxu0 %v578
    %621 = vmatprep.subr.bf16.mxu0 0
    %622 = vmatpush1.bf16.msra.mxu0 %v577
    %623 = vmatprep.subr.bf16.mxu0 0
    %624 = vmatpush1.bf16.msra.mxu0 %v576
    %625 = vmatprep.subr.bf16.mxu0 0
    %626 = vmatpush1.bf16.msra.mxu0 %v575
    %627 = vmatprep.subr.bf16.mxu0 0
    %628 = vmatpush1.bf16.msra.mxu0 %v574
    %629 = vmatprep.subr.bf16.mxu0 0
    %630 = vmatpush1.bf16.msra.mxu0 %v573
    %631 = vmatprep.subr.bf16.mxu0 0
    %632 = vmatpush1.bf16.msra.mxu0 %v572
    %633 = vmatprep.subr.bf16.mxu0 0
    %634 = vmatpush1.bf16.msra.mxu0 %v571
    %635 = vmatprep.subr.bf16.mxu0 0
    %636 = vmatpush2.bf16.msra.mxu0 %v586
    %637 = vmatprep.subr.bf16.mxu0 0
    %638 = vmatpush2.bf16.msra.mxu0 %v585
    %639 = vmatprep.subr.bf16.mxu0 0
    %640 = vmatpush2.bf16.msra.mxu0 %v584
    %641 = vmatprep.subr.bf16.mxu0 0
    %642 = vmatpush2.bf16.msra.mxu0 %v583
    %643 = vmatprep.subr.bf16.mxu0 0
    %644 = vmatpush2.bf16.msra.mxu0 %v582
    %645 = vmatprep.subr.bf16.mxu0 0
    %646 = vmatpush2.bf16.msra.mxu0 %v581
    %647 = vmatprep.subr.bf16.mxu0 0
    %648 = vmatpush2.bf16.msra.mxu0 %v580
    %649 = vmatprep.subr.bf16.mxu0 0
    %650 = vmatpush2.bf16.msra.mxu0 %v579
    %651 = vmatprep.mubr.bf16.mxu0 %v422
    %652 = vmatmul.mubr.bf16.gmra.mxu0 %v421
    %v653 = vpop.f32.mrf.mxu0
    %v654 = vadd.f32 0.0, %v653
    %v655 = vpop.f32.mrf.mxu0
    %v656 = vpop.f32.mrf.mxu0
    %v657 = vadd.f32 0.0, %v656
    %v658 = vpop.f32.mrf.mxu0
    %659 = vmatprep.mubr.bf16.mxu0 %v425
    %660 = vmatmul.mubr.bf16.gmra.mxu0 %v424
    %v661 = vpop.f32.mrf.mxu0
    %v662 = vadd.f32 0.0, %v661
    %v663 = vpop.f32.mrf.mxu0
    %v664 = vpop.f32.mrf.mxu0
    %v665 = vadd.f32 0.0, %v664
    %v666 = vpop.f32.mrf.mxu0
    %667 = vdwg.mxu0
    %668 = vmatprep.subr.bf16.mxu0 0
    %669 = vmatpush1.bf16.msra.mxu0 %v594
    %670 = vmatprep.subr.bf16.mxu0 0
    %671 = vmatpush1.bf16.msra.mxu0 %v593
    %672 = vmatprep.subr.bf16.mxu0 0
    %673 = vmatpush1.bf16.msra.mxu0 %v592
    %674 = vmatprep.subr.bf16.mxu0 0
    %675 = vmatpush1.bf16.msra.mxu0 %v591
    %676 = vmatprep.subr.bf16.mxu0 0
    %677 = vmatpush1.bf16.msra.mxu0 %v590
    %678 = vmatprep.subr.bf16.mxu0 0
    %679 = vmatpush1.bf16.msra.mxu0 %v589
    %680 = vmatprep.subr.bf16.mxu0 0
    %681 = vmatpush1.bf16.msra.mxu0 %v588
    %682 = vmatprep.subr.bf16.mxu0 0
    %683 = vmatpush1.bf16.msra.mxu0 %v587
    %684 = vmatprep.subr.bf16.mxu0 0
    %685 = vmatpush2.bf16.msra.mxu0 0
    %686 = vmatprep.subr.bf16.mxu0 0
    %687 = vmatpush2.bf16.msra.mxu0 0
    %688 = vmatprep.subr.bf16.mxu0 0
    %689 = vmatpush2.bf16.msra.mxu0 0
    %690 = vmatprep.subr.bf16.mxu0 0
    %691 = vmatpush2.bf16.msra.mxu0 0
    %692 = vmatprep.subr.bf16.mxu0 0
    %693 = vmatpush2.bf16.msra.mxu0 0
    %694 = vmatprep.subr.bf16.mxu0 0
    %695 = vmatpush2.bf16.msra.mxu0 0
    %696 = vmatprep.subr.bf16.mxu0 0
    %697 = vmatpush2.bf16.msra.mxu0 0
    %698 = vmatprep.subr.bf16.mxu0 0
    %699 = vmatpush2.bf16.msra.mxu0 0
    %700 = vmatprep.mubr.bf16.mxu0 0
    %701 = vmatmul.mubr.bf16.gmra.mxu0 %v423
    %v702 = vpop.f32.mrf.mxu0
    %v703 = vadd.f32 %v654, %v702
    %v704 = vpop.f32.mrf.mxu0
    %v705 = vpop.f32.mrf.mxu0
    %v706 = vadd.f32 %v657, %v705
    %v707 = vpop.f32.mrf.mxu0
    %708 = vmatprep.mubr.bf16.mxu0 0
    %709 = vmatmul.mubr.bf16.gmra.mxu0 %v426
    %v710 = vpop.f32.mrf.mxu0
    %v711 = vadd.f32 %v662, %v710
    %v712 = vpop.f32.mrf.mxu0
    %v713 = vpop.f32.mrf.mxu0
    %v714 = vadd.f32 %v665, %v713
    %v715 = vpop.f32.mrf.mxu0
    %716 = vdwg.mxu0
    %v717 = vadd.f32 %v703, %v706
    %v718 = vadd.f32 %v717, %v711
    %v719 = vadd.f32 %v718, %v714
    %v720 = vrot.slane %v719, 4
    %v721 = vadd.f32 %v719, %v720
    %v722 = vrot.slane %v721, 2
    %v723 = vadd.f32 %v721, %v722
    %v724 = vrot.slane %v723, 1
    %v725 = vadd.f32 %v723, %v724
    %v726 = vmul.f32 %v703, %v703
    %v727 = vmul.f32 %v706, %v706
    %v728 = vmul.f32 %v711, %v711
    %v729 = vmul.f32 %v714, %v714
    %v730 = vadd.f32 %v726, %v727
    %v731 = vadd.f32 %v730, %v728
    %v732 = vadd.f32 %v731, %v729
    %v733 = vrot.slane %v732, 4
    %v734 = vadd.f32 %v732, %v733
    %v735 = vrot.slane %v734, 2
    %v736 = vadd.f32 %v734, %v735
    %v737 = vrot.slane %v736, 1
    %v738 = vadd.f32 %v736, %v737
    %vm739 = vcmask 1040384
    %v740 = vsel %vm739, %v725, %v738
    %741 = vmatprep.subr.mxu0 0.0
    %742 = vmatpush1.msra.mxu0 %v394
    %743 = vmatprep.subr.mxu0 0.0
    %744 = vmatpush1.msra.mxu0 %v393
    %745 = vmatprep.subr.mxu0 0.0
    %746 = vmatpush1.msra.mxu0 %v392
    %747 = vmatprep.subr.mxu0 0.0
    %748 = vmatpush1.msra.mxu0 %v391
    %749 = vmatprep.subr.mxu0 0.0
    %750 = vmatpush1.msra.mxu0 %v390
    %751 = vmatprep.subr.mxu0 0.0
    %752 = vmatpush1.msra.mxu0 %v389
    %753 = vmatprep.subr.mxu0 0.0
    %754 = vmatpush1.msra.mxu0 %v388
    %755 = vmatprep.subr.mxu0 0.0
    %756 = vmatpush1.msra.mxu0 %v387
    %757 = vmatprep.subr.mxu0 0.0
    %758 = vmatpush1.msra.mxu0 %v386
    %759 = vmatprep.subr.mxu0 0.0
    %760 = vmatpush1.msra.mxu0 %v385
    %761 = vmatprep.subr.mxu0 0.0
    %762 = vmatpush1.msra.mxu0 %v384
    %763 = vmatprep.subr.mxu0 0.0
    %764 = vmatpush1.msra.mxu0 %v383
    %765 = vmatprep.subr.mxu0 0.0
    %766 = vmatpush1.msra.mxu0 %v382
    %767 = vmatprep.subr.mxu0 0.0
    %768 = vmatpush1.msra.mxu0 %v381
    %769 = vmatprep.subr.mxu0 0.0
    %770 = vmatpush1.msra.mxu0 %v380
    %771 = vmatprep.subr.mxu0 0.0
    %772 = vmatpush1.msra.mxu0 %v379
    %773 = vmatprep.subr.mxu0 0.0
    %774 = vmatpush2.msra.mxu0 0.0
    %775 = vmatprep.subr.mxu0 0.0
    %776 = vmatpush2.msra.mxu0 0.0
    %777 = vmatprep.subr.mxu0 0.0
    %778 = vmatpush2.msra.mxu0 0.0
    %779 = vmatprep.subr.mxu0 0.0
    %780 = vmatpush2.msra.mxu0 0.0
    %781 = vmatprep.subr.mxu0 0.0
    %782 = vmatpush2.msra.mxu0 0.0
    %783 = vmatprep.subr.mxu0 0.0
    %784 = vmatpush2.msra.mxu0 0.0
    %785 = vmatprep.subr.mxu0 0.0
    %786 = vmatpush2.msra.mxu0 0.0
    %787 = vmatprep.subr.mxu0 0.0
    %788 = vmatpush2.msra.mxu0 0.0
    %789 = vmatprep.subr.mxu0 0.0
    %790 = vmatpush2.msra.mxu0 0.0
    %791 = vmatprep.subr.mxu0 0.0
    %792 = vmatpush2.msra.mxu0 0.0
    %793 = vmatprep.subr.mxu0 0.0
    %794 = vmatpush2.msra.mxu0 0.0
    %795 = vmatprep.subr.mxu0 0.0
    %796 = vmatpush2.msra.mxu0 0.0
    %797 = vmatprep.subr.mxu0 0.0
    %798 = vmatpush2.msra.mxu0 0.0
    %799 = vmatprep.subr.mxu0 0.0
    %800 = vmatpush2.msra.mxu0 0.0
    %801 = vmatprep.subr.mxu0 0.0
    %802 = vmatpush2.msra.mxu0 0.0
    %803 = vmatprep.subr.mxu0 0.0
    %804 = vmatpush2.msra.mxu0 0.0
    %805 = vmatprep.mubr.f32.mxu0 0.0
    %806 = vmatmul.mubr.f32.gmra.mxu0 %v740
    %v807 = vpop.f32.mrf.mxu0
    %v808 = vadd.f32 0.0, %v807
    %v809 = vpop.f32.mrf.mxu0
    %810 = vdwg.mxu0
    %v811 = vmul.f32 %v808, %v808
    %v813 = vrot.slane %v811, 7
    %v815 = vsub.f32 %v808, %v813
    %v816 = vmax.f32 %v815, 0.0
    %v817 = vld [vmem:[%s4] sm:$0x1]
    %v818 = vadd.f32 %v816, 1e-05
    %v819 = vrsqrt.pop %v818
    %v821 = vrot.slane %v819, 1
    %v823 = vmul.f32 %v817, %v821
    %v824 = vld [vmem:[%s5] sm:$0x1]
    %v825 = vmul.f32 %v808, %v823
    %v826 = vsub.f32 %v824, %v825
    %v827 = vlaneseq
    %v828 = vshrl.u32 %v827, 7
    %v829 = vsub.s32 0, %v828
    %v830 = vrot.slane %v823, %v829
    %v831 = vmul.f32 %v703, %v830
    %v832 = vmul.f32 %v706, %v830
    %v833 = vmul.f32 %v711, %v830
    %v834 = vmul.f32 %v714, %v830
    %v835 = vlaneseq
    %v836 = vshrl.u32 %v835, 7
    %v837 = vsub.s32 0, %v836
    %v838 = vrot.slane %v826, %v837
    %v839 = vadd.f32 %v831, %v838
    %v840 = vadd.f32 %v832, %v838
    %v841 = vadd.f32 %v833, %v838
    %v842 = vadd.f32 %v834, %v838
    %vm843 = vcmp.gt.f32.partialorder %v839, 0.0
    %vm844 = vcmp.gt.f32.partialorder %v840, 0.0
    %vm845 = vcmp.gt.f32.partialorder %v841, 0.0
    %vm846 = vcmp.gt.f32.partialorder %v842, 0.0
    %v847 = vmul.f32 %v839, 0.1
    %v848 = vmul.f32 %v840, 0.1
    %v849 = vmul.f32 %v841, 0.1
    %v850 = vmul.f32 %v842, 0.1
    %v851 = vsel %vm843, %v839, %v847
    %v852 = vsel %vm844, %v840, %v848
    %v853 = vsel %vm845, %v841, %v849
    %v854 = vsel %vm846, %v842, %v850
    %v855 = vrot.slane %v851, 1
    %v856 = vrot.slane %v852, 1
    %v857 = vrot.slane %v853, 1
    %v858 = vrot.slane %v854, 1
    %v859 = vsel %vm399, %v857, %v858
    %v860 = vsel %vm399, %v856, %v857
    %v861 = vsel %vm399, %v855, %v856
    %v862 = vsel %vm399, %v858, %v855
    %v863 = vsel %vm141, %v861, 0.0
    %v864 = vsel %vm142, %v860, 0.0
    %v865 = vsel %vm143, %v859, 0.0
    %v866 = vsel %vm144, %v862, 0.0
    %v867 = vrot.slane %v851, 7
    %v868 = vrot.slane %v852, 7
    %v869 = vrot.slane %v853, 7
    %v870 = vrot.slane %v854, 7
    %v871 = vsel %vm412, %v869, %v870
    %v872 = vsel %vm412, %v868, %v869
    %v873 = vsel %vm412, %v867, %v868
    %v874 = vsel %vm412, %v870, %v867
    %v875 = vsel %vm137, %v874, 0.0
    %v876 = vsel %vm138, %v873, 0.0
    %v877 = vsel %vm139, %v872, 0.0
    %v878 = vsel %vm140, %v871, 0.0
    %v879 = vpack.c.bf16 %v876, %v875
    %v880 = vpack.c.bf16 %v852, %v851
    %v881 = vpack.c.bf16 %v864, %v863
    %v882 = vpack.c.bf16 %v878, %v877
    %v883 = vpack.c.bf16 %v854, %v853
    %v884 = vpack.c.bf16 %v866, %v865
    %v885 = vld [vmem:[#allocation7] sm:$0xf]
    %v886 = vld [vmem:[#allocation7 + $0x4] sm:$0xf]
    %v887 = vld [vmem:[#allocation7 + $0x8] sm:$0xf]
    %v888 = vld [vmem:[#allocation7 + $0xc] sm:$0xf]
    %v889 = vld [vmem:[#allocation7 + $0x10] sm:$0xf]
    %v890 = vld [vmem:[#allocation7 + $0x14] sm:$0xf]
    %v891 = vld [vmem:[#allocation7 + $0x18] sm:$0xf]
    %v892 = vld [vmem:[#allocation7 + $0x1c] sm:$0xf]
    %v893 = vld [vmem:[#allocation7 + $0x20] sm:$0xf]
    %v894 = vld [vmem:[#allocation7 + $0x24] sm:$0xf]
    %v895 = vld [vmem:[#allocation7 + $0x28] sm:$0xf]
    %v896 = vld [vmem:[#allocation7 + $0x2c] sm:$0xf]
    %v897 = vld [vmem:[#allocation7 + $0x30] sm:$0xf]
    %v898 = vld [vmem:[#allocation7 + $0x34] sm:$0xf]
    %v899 = vld [vmem:[#allocation7 + $0x38] sm:$0xf]
    %v900 = vld [vmem:[#allocation7 + $0x3c] sm:$0xf]
    %v901 = vld [vmem:[#allocation7 + $0x40] sm:$0xf]
    %v902 = vld [vmem:[#allocation7 + $0x44] sm:$0xf]
    %v903 = vld [vmem:[#allocation7 + $0x48] sm:$0xf]
    %v904 = vld [vmem:[#allocation7 + $0x4c] sm:$0xf]
    %v905 = vld [vmem:[#allocation7 + $0x50] sm:$0xf]
    %v906 = vld [vmem:[#allocation7 + $0x54] sm:$0xf]
    %v907 = vld [vmem:[#allocation7 + $0x58] sm:$0xf]
    %v908 = vld [vmem:[#allocation7 + $0x5c] sm:$0xf]
    %v909 = vld [vmem:[#allocation7 + $0x60] sm:$0xf]
    %v910 = vld [vmem:[#allocation7 + $0x64] sm:$0xf]
    %v911 = vld [vmem:[#allocation7 + $0x68] sm:$0xf]
    %v912 = vld [vmem:[#allocation7 + $0x6c] sm:$0xf]
    %v913 = vld [vmem:[#allocation7 + $0x70] sm:$0xf]
    %v914 = vld [vmem:[#allocation7 + $0x74] sm:$0xf]
    %v915 = vld [vmem:[#allocation7 + $0x78] sm:$0xf]
    %v916 = vld [vmem:[#allocation7 + $0x7c] sm:$0xf]
    %v917 = vld [vmem:[#allocation7 + $0x80] sm:$0xf]
    %v918 = vld [vmem:[#allocation7 + $0x84] sm:$0xf]
    %v919 = vld [vmem:[#allocation7 + $0x88] sm:$0xf]
    %v920 = vld [vmem:[#allocation7 + $0x8c] sm:$0xf]
    %v921 = vld [vmem:[#allocation7 + $0x90] sm:$0xf]
    %v922 = vld [vmem:[#allocation7 + $0x94] sm:$0xf]
    %v923 = vld [vmem:[#allocation7 + $0x98] sm:$0xf]
    %v924 = vld [vmem:[#allocation7 + $0x9c] sm:$0xf]
    %v925 = vld [vmem:[#allocation7 + $0xa0] sm:$0xf]
    %v926 = vld [vmem:[#allocation7 + $0xa4] sm:$0xf]
    %v927 = vld [vmem:[#allocation7 + $0xa8] sm:$0xf]
    %v928 = vld [vmem:[#allocation7 + $0xac] sm:$0xf]
    %v929 = vld [vmem:[#allocation7 + $0xb0] sm:$0xf]
    %v930 = vld [vmem:[#allocation7 + $0xb4] sm:$0xf]
    %v931 = vld [vmem:[#allocation7 + $0xb8] sm:$0xf]
    %v932 = vld [vmem:[#allocation7 + $0xbc] sm:$0xf]
    %v981 = vunpack.c.l.b16 %v885
    %v982 = vunpack.c.l.b16 %v886
    %v983 = vunpack.c.l.b16 %v887
    %v984 = vunpack.c.l.b16 %v888
    %v985 = vunpack.c.l.b16 %v889
    %v986 = vunpack.c.l.b16 %v890
    %v987 = vunpack.c.l.b16 %v891
    %v988 = vunpack.c.l.b16 %v892
    %v989 = vunpack.c.l.b16 %v893
    %v990 = vunpack.c.l.b16 %v894
    %v991 = vunpack.c.l.b16 %v895
    %v992 = vunpack.c.l.b16 %v896
    %v993 = vunpack.c.l.b16 %v897
    %v994 = vunpack.c.l.b16 %v898
    %v995 = vunpack.c.l.b16 %v899
    %v996 = vunpack.c.l.b16 %v900
    %v997 = vunpack.c.l.b16 %v901
    %v998 = vunpack.c.l.b16 %v902
    %v999 = vunpack.c.l.b16 %v903
    %v1000 = vunpack.c.l.b16 %v904
    %v1001 = vunpack.c.l.b16 %v905
    %v1002 = vunpack.c.l.b16 %v906
    %v1003 = vunpack.c.l.b16 %v907
    %v1004 = vunpack.c.l.b16 %v908
    %v1005 = vunpack.c.l.b16 %v909
    %v1006 = vunpack.c.l.b16 %v910
    %v1007 = vunpack.c.l.b16 %v911
    %v1008 = vunpack.c.l.b16 %v912
    %v1009 = vunpack.c.l.b16 %v913
    %v1010 = vunpack.c.l.b16 %v914
    %v1011 = vunpack.c.l.b16 %v915
    %v1012 = vunpack.c.l.b16 %v916
    %v1013 = vunpack.c.l.b16 %v917
    %v1014 = vunpack.c.l.b16 %v918
    %v1015 = vunpack.c.l.b16 %v919
    %v1016 = vunpack.c.l.b16 %v920
    %v1017 = vunpack.c.l.b16 %v921
    %v1018 = vunpack.c.l.b16 %v922
    %v1019 = vunpack.c.l.b16 %v923
    %v1020 = vunpack.c.l.b16 %v924
    %v1021 = vunpack.c.l.b16 %v925
    %v1022 = vunpack.c.l.b16 %v926
    %v1023 = vunpack.c.l.b16 %v927
    %v1024 = vunpack.c.l.b16 %v928
    %v1025 = vunpack.c.l.b16 %v929
    %v1026 = vunpack.c.l.b16 %v930
    %v1027 = vunpack.c.l.b16 %v931
    %v1028 = vunpack.c.l.b16 %v932
    %v1029 = vpack.c.b16 %v982, %v981
    %v1030 = vpack.c.b16 %v984, %v983
    %v1031 = vpack.c.b16 %v986, %v985
    %v1032 = vpack.c.b16 %v988, %v987
    %v1033 = vpack.c.b16 %v990, %v989
    %v1034 = vpack.c.b16 %v992, %v991
    %v1035 = vpack.c.b16 %v994, %v993
    %v1036 = vpack.c.b16 %v996, %v995
    %v1037 = vpack.c.b16 %v998, %v997
    %v1038 = vpack.c.b16 %v1000, %v999
    %v1039 = vpack.c.b16 %v1002, %v1001
    %v1040 = vpack.c.b16 %v1004, %v1003
    %v1041 = vpack.c.b16 %v1006, %v1005
    %v1042 = vpack.c.b16 %v1008, %v1007
    %v1043 = vpack.c.b16 %v1010, %v1009
    %v1044 = vpack.c.b16 %v1012, %v1011
    %v1045 = vpack.c.b16 %v1014, %v1013
    %v1046 = vpack.c.b16 %v1016, %v1015
    %v1047 = vpack.c.b16 %v1018, %v1017
    %v1048 = vpack.c.b16 %v1020, %v1019
    %v1049 = vpack.c.b16 %v1022, %v1021
    %v1050 = vpack.c.b16 %v1024, %v1023
    %v1051 = vpack.c.b16 %v1026, %v1025
    %v1052 = vpack.c.b16 %v1028, %v1027
    %1077 = vmatprep.subr.bf16.mxu0 0
    %1078 = vmatpush1.bf16.msra.mxu0 %v1036
    %1079 = vmatprep.subr.bf16.mxu0 0
    %1080 = vmatpush1.bf16.msra.mxu0 %v1035
    %1081 = vmatprep.subr.bf16.mxu0 0
    %1082 = vmatpush1.bf16.msra.mxu0 %v1034
    %1083 = vmatprep.subr.bf16.mxu0 0
    %1084 = vmatpush1.bf16.msra.mxu0 %v1033
    %1085 = vmatprep.subr.bf16.mxu0 0
    %1086 = vmatpush1.bf16.msra.mxu0 %v1032
    %1087 = vmatprep.subr.bf16.mxu0 0
    %1088 = vmatpush1.bf16.msra.mxu0 %v1031
    %1089 = vmatprep.subr.bf16.mxu0 0
    %1090 = vmatpush1.bf16.msra.mxu0 %v1030
    %1091 = vmatprep.subr.bf16.mxu0 0
    %1092 = vmatpush1.bf16.msra.mxu0 %v1029
    %1093 = vmatprep.subr.bf16.mxu0 0
    %1094 = vmatpush2.bf16.msra.mxu0 %v1044
    %1095 = vmatprep.subr.bf16.mxu0 0
    %1096 = vmatpush2.bf16.msra.mxu0 %v1043
    %1097 = vmatprep.subr.bf16.mxu0 0
    %1098 = vmatpush2.bf16.msra.mxu0 %v1042
    %1099 = vmatprep.subr.bf16.mxu0 0
    %1100 = vmatpush2.bf16.msra.mxu0 %v1041
    %1101 = vmatprep.subr.bf16.mxu0 0
    %1102 = vmatpush2.bf16.msra.mxu0 %v1040
    %1103 = vmatprep.subr.bf16.mxu0 0
    %1104 = vmatpush2.bf16.msra.mxu0 %v1039
    %1105 = vmatprep.subr.bf16.mxu0 0
    %1106 = vmatpush2.bf16.msra.mxu0 %v1038
    %1107 = vmatprep.subr.bf16.mxu0 0
    %1108 = vmatpush2.bf16.msra.mxu0 %v1037
    %1109 = vmatprep.mubr.bf16.mxu0 %v880
    %1110 = vmatmul.mubr.bf16.gmra.mxu0 %v879
    %v1111 = vpop.f32.mrf.mxu0
    %v1112 = vadd.f32 0.0, %v1111
    %v1113 = vpop.f32.mrf.mxu0
    %v1114 = vpop.f32.mrf.mxu0
    %v1115 = vadd.f32 0.0, %v1114
    %v1116 = vpop.f32.mrf.mxu0
    %1117 = vmatprep.mubr.bf16.mxu0 %v883
    %1118 = vmatmul.mubr.bf16.gmra.mxu0 %v882
    %v1119 = vpop.f32.mrf.mxu0
    %v1120 = vadd.f32 0.0, %v1119
    %v1121 = vpop.f32.mrf.mxu0
    %v1122 = vpop.f32.mrf.mxu0
    %v1123 = vadd.f32 0.0, %v1122
    %v1124 = vpop.f32.mrf.mxu0
    %1125 = vdwg.mxu0
    %1126 = vmatprep.subr.bf16.mxu0 0
    %1127 = vmatpush1.bf16.msra.mxu0 %v1052
    %1128 = vmatprep.subr.bf16.mxu0 0
    %1129 = vmatpush1.bf16.msra.mxu0 %v1051
    %1130 = vmatprep.subr.bf16.mxu0 0
    %1131 = vmatpush1.bf16.msra.mxu0 %v1050
    %1132 = vmatprep.subr.bf16.mxu0 0
    %1133 = vmatpush1.bf16.msra.mxu0 %v1049
    %1134 = vmatprep.subr.bf16.mxu0 0
    %1135 = vmatpush1.bf16.msra.mxu0 %v1048
    %1136 = vmatprep.subr.bf16.mxu0 0
    %1137 = vmatpush1.bf16.msra.mxu0 %v1047
    %1138 = vmatprep.subr.bf16.mxu0 0
    %1139 = vmatpush1.bf16.msra.mxu0 %v1046
    %1140 = vmatprep.subr.bf16.mxu0 0
    %1141 = vmatpush1.bf16.msra.mxu0 %v1045
    %1142 = vmatprep.subr.bf16.mxu0 0
    %1143 = vmatpush2.bf16.msra.mxu0 0
    %1144 = vmatprep.subr.bf16.mxu0 0
    %1145 = vmatpush2.bf16.msra.mxu0 0
    %1146 = vmatprep.subr.bf16.mxu0 0
    %1147 = vmatpush2.bf16.msra.mxu0 0
    %1148 = vmatprep.subr.bf16.mxu0 0
    %1149 = vmatpush2.bf16.msra.mxu0 0
    %1150 = vmatprep.subr.bf16.mxu0 0
    %1151 = vmatpush2.bf16.msra.mxu0 0
    %1152 = vmatprep.subr.bf16.mxu0 0
    %1153 = vmatpush2.bf16.msra.mxu0 0
    %1154 = vmatprep.subr.bf16.mxu0 0
    %1155 = vmatpush2.bf16.msra.mxu0 0
    %1156 = vmatprep.subr.bf16.mxu0 0
    %1157 = vmatpush2.bf16.msra.mxu0 0
    %1158 = vmatprep.mubr.bf16.mxu0 0
    %1159 = vmatmul.mubr.bf16.gmra.mxu0 %v881
    %v1160 = vpop.f32.mrf.mxu0
    %v1161 = vadd.f32 %v1112, %v1160
    %v1162 = vpop.f32.mrf.mxu0
    %v1163 = vpop.f32.mrf.mxu0
    %v1164 = vadd.f32 %v1115, %v1163
    %v1165 = vpop.f32.mrf.mxu0
    %1166 = vmatprep.mubr.bf16.mxu0 0
    %1167 = vmatmul.mubr.bf16.gmra.mxu0 %v884
    %v1168 = vpop.f32.mrf.mxu0
    %v1169 = vadd.f32 %v1120, %v1168
    %v1170 = vpop.f32.mrf.mxu0
    %v1171 = vpop.f32.mrf.mxu0
    %v1172 = vadd.f32 %v1123, %v1171
    %v1173 = vpop.f32.mrf.mxu0
    %1174 = vdwg.mxu0
    %v1175 = vadd.f32 %v1161, %v1164
    %v1176 = vadd.f32 %v1175, %v1169
    %v1177 = vadd.f32 %v1176, %v1172
    %v1178 = vrot.slane %v1177, 4
    %v1179 = vadd.f32 %v1177, %v1178
    %v1180 = vrot.slane %v1179, 2
    %v1181 = vadd.f32 %v1179, %v1180
    %v1182 = vrot.slane %v1181, 1
    %v1183 = vadd.f32 %v1181, %v1182
    %v1184 = vmul.f32 %v1161, %v1161
    %v1185 = vmul.f32 %v1164, %v1164
    %v1186 = vmul.f32 %v1169, %v1169
    %v1187 = vmul.f32 %v1172, %v1172
    %v1188 = vadd.f32 %v1184, %v1185
    %v1189 = vadd.f32 %v1188, %v1186
    %v1190 = vadd.f32 %v1189, %v1187
    %v1191 = vrot.slane %v1190, 4
    %v1192 = vadd.f32 %v1190, %v1191
    %v1193 = vrot.slane %v1192, 2
    %v1194 = vadd.f32 %v1192, %v1193
    %v1195 = vrot.slane %v1194, 1
    %v1196 = vadd.f32 %v1194, %v1195
    %v1197 = vsel %vm739, %v1183, %v1196
    %1198 = vmatprep.subr.mxu0 0.0
    %1199 = vmatpush1.msra.mxu0 %v394
    %1200 = vmatprep.subr.mxu0 0.0
    %1201 = vmatpush1.msra.mxu0 %v393
    %1202 = vmatprep.subr.mxu0 0.0
    %1203 = vmatpush1.msra.mxu0 %v392
    %1204 = vmatprep.subr.mxu0 0.0
    %1205 = vmatpush1.msra.mxu0 %v391
    %1206 = vmatprep.subr.mxu0 0.0
    %1207 = vmatpush1.msra.mxu0 %v390
    %1208 = vmatprep.subr.mxu0 0.0
    %1209 = vmatpush1.msra.mxu0 %v389
    %1210 = vmatprep.subr.mxu0 0.0
    %1211 = vmatpush1.msra.mxu0 %v388
    %1212 = vmatprep.subr.mxu0 0.0
    %1213 = vmatpush1.msra.mxu0 %v387
    %1214 = vmatprep.subr.mxu0 0.0
    %1215 = vmatpush1.msra.mxu0 %v386
    %1216 = vmatprep.subr.mxu0 0.0
    %1217 = vmatpush1.msra.mxu0 %v385
    %1218 = vmatprep.subr.mxu0 0.0
    %1219 = vmatpush1.msra.mxu0 %v384
    %1220 = vmatprep.subr.mxu0 0.0
    %1221 = vmatpush1.msra.mxu0 %v383
    %1222 = vmatprep.subr.mxu0 0.0
    %1223 = vmatpush1.msra.mxu0 %v382
    %1224 = vmatprep.subr.mxu0 0.0
    %1225 = vmatpush1.msra.mxu0 %v381
    %1226 = vmatprep.subr.mxu0 0.0
    %1227 = vmatpush1.msra.mxu0 %v380
    %1228 = vmatprep.subr.mxu0 0.0
    %1229 = vmatpush1.msra.mxu0 %v379
    %1230 = vmatprep.subr.mxu0 0.0
    %1231 = vmatpush2.msra.mxu0 0.0
    %1232 = vmatprep.subr.mxu0 0.0
    %1233 = vmatpush2.msra.mxu0 0.0
    %1234 = vmatprep.subr.mxu0 0.0
    %1235 = vmatpush2.msra.mxu0 0.0
    %1236 = vmatprep.subr.mxu0 0.0
    %1237 = vmatpush2.msra.mxu0 0.0
    %1238 = vmatprep.subr.mxu0 0.0
    %1239 = vmatpush2.msra.mxu0 0.0
    %1240 = vmatprep.subr.mxu0 0.0
    %1241 = vmatpush2.msra.mxu0 0.0
    %1242 = vmatprep.subr.mxu0 0.0
    %1243 = vmatpush2.msra.mxu0 0.0
    %1244 = vmatprep.subr.mxu0 0.0
    %1245 = vmatpush2.msra.mxu0 0.0
    %1246 = vmatprep.subr.mxu0 0.0
    %1247 = vmatpush2.msra.mxu0 0.0
    %1248 = vmatprep.subr.mxu0 0.0
    %1249 = vmatpush2.msra.mxu0 0.0
    %1250 = vmatprep.subr.mxu0 0.0
    %1251 = vmatpush2.msra.mxu0 0.0
    %1252 = vmatprep.subr.mxu0 0.0
    %1253 = vmatpush2.msra.mxu0 0.0
    %1254 = vmatprep.subr.mxu0 0.0
    %1255 = vmatpush2.msra.mxu0 0.0
    %1256 = vmatprep.subr.mxu0 0.0
    %1257 = vmatpush2.msra.mxu0 0.0
    %1258 = vmatprep.subr.mxu0 0.0
    %1259 = vmatpush2.msra.mxu0 0.0
    %1260 = vmatprep.subr.mxu0 0.0
    %1261 = vmatpush2.msra.mxu0 0.0
    %1262 = vmatprep.mubr.f32.mxu0 0.0
    %1263 = vmatmul.mubr.f32.gmra.mxu0 %v1197
    %v1264 = vpop.f32.mrf.mxu0
    %v1265 = vadd.f32 0.0, %v1264
    %v1266 = vpop.f32.mrf.mxu0
    %1267 = vdwg.mxu0
    %v1268 = vmul.f32 %v1265, %v1265
    %v1270 = vrot.slane %v1268, 7
    %v1272 = vsub.f32 %v1265, %v1270
    %v1273 = vmax.f32 %v1272, 0.0
    %v1274 = vld [vmem:[%s4 + $0x1] sm:$0x1]
    %v1275 = vadd.f32 %v1273, 1e-05
    %v1276 = vrsqrt.pop %v1275
    %v1278 = vrot.slane %v1276, 1
    %v1280 = vmul.f32 %v1274, %v1278
    %v1281 = vld [vmem:[%s5 + $0x1] sm:$0x1]
    %v1282 = vmul.f32 %v1265, %v1280
    %v1283 = vsub.f32 %v1281, %v1282
    %v1284 = vlaneseq
    %v1285 = vshrl.u32 %v1284, 7
    %v1286 = vsub.s32 0, %v1285
    %v1287 = vrot.slane %v1280, %v1286
    %v1288 = vmul.f32 %v1161, %v1287
    %v1289 = vmul.f32 %v1164, %v1287
    %v1290 = vmul.f32 %v1169, %v1287
    %v1291 = vmul.f32 %v1172, %v1287
    %v1292 = vlaneseq
    %v1293 = vshrl.u32 %v1292, 7
    %v1294 = vsub.s32 0, %v1293
    %v1295 = vrot.slane %v1283, %v1294
    %v1296 = vadd.f32 %v1288, %v1295
    %v1297 = vadd.f32 %v1289, %v1295
    %v1298 = vadd.f32 %v1290, %v1295
    %v1299 = vadd.f32 %v1291, %v1295
    %vm1300 = vcmp.gt.f32.partialorder %v1296, 0.0
    %vm1301 = vcmp.gt.f32.partialorder %v1297, 0.0
    %vm1302 = vcmp.gt.f32.partialorder %v1298, 0.0
    %vm1303 = vcmp.gt.f32.partialorder %v1299, 0.0
    %v1304 = vmul.f32 %v1296, 0.1
    %v1305 = vmul.f32 %v1297, 0.1
    %v1306 = vmul.f32 %v1298, 0.1
    %v1307 = vmul.f32 %v1299, 0.1
    %v1308 = vsel %vm1300, %v1296, %v1304
    %v1309 = vsel %vm1301, %v1297, %v1305
    %v1310 = vsel %vm1302, %v1298, %v1306
    %v1311 = vsel %vm1303, %v1299, %v1307
    %v1312 = vrot.slane %v1308, 1
    %v1313 = vrot.slane %v1309, 1
    %v1314 = vrot.slane %v1310, 1
    %v1315 = vrot.slane %v1311, 1
    %v1316 = vsel %vm399, %v1314, %v1315
    %v1317 = vsel %vm399, %v1313, %v1314
    %v1318 = vsel %vm399, %v1312, %v1313
    %v1319 = vsel %vm399, %v1315, %v1312
    %v1320 = vsel %vm141, %v1318, 0.0
    %v1321 = vsel %vm142, %v1317, 0.0
    %v1322 = vsel %vm143, %v1316, 0.0
    %v1323 = vsel %vm144, %v1319, 0.0
    %v1324 = vrot.slane %v1308, 7
    %v1325 = vrot.slane %v1309, 7
    %v1326 = vrot.slane %v1310, 7
    %v1327 = vrot.slane %v1311, 7
    %v1328 = vsel %vm412, %v1326, %v1327
    %v1329 = vsel %vm412, %v1325, %v1326
    %v1330 = vsel %vm412, %v1324, %v1325
    %v1331 = vsel %vm412, %v1327, %v1324
    %v1332 = vsel %vm137, %v1331, 0.0
    %v1333 = vsel %vm138, %v1330, 0.0
    %v1334 = vsel %vm139, %v1329, 0.0
    %v1335 = vsel %vm140, %v1328, 0.0
    %v1336 = vpack.c.bf16 %v1333, %v1332
    %v1337 = vpack.c.bf16 %v1309, %v1308
    %v1338 = vpack.c.bf16 %v1321, %v1320
    %v1339 = vpack.c.bf16 %v1335, %v1334
    %v1340 = vpack.c.bf16 %v1311, %v1310
    %v1341 = vpack.c.bf16 %v1323, %v1322
    %v1342 = vld [vmem:[#allocation8] sm:$0xf]
    %v1343 = vld [vmem:[#allocation8 + $0x4] sm:$0xf]
    %v1344 = vld [vmem:[#allocation8 + $0x8] sm:$0xf]
    %v1345 = vld [vmem:[#allocation8 + $0xc] sm:$0xf]
    %v1346 = vld [vmem:[#allocation8 + $0x10] sm:$0xf]
    %v1347 = vld [vmem:[#allocation8 + $0x14] sm:$0xf]
    %v1348 = vld [vmem:[#allocation8 + $0x18] sm:$0xf]
    %v1349 = vld [vmem:[#allocation8 + $0x1c] sm:$0xf]
    %v1350 = vld [vmem:[#allocation8 + $0x20] sm:$0xf]
    %v1351 = vld [vmem:[#allocation8 + $0x24] sm:$0xf]
    %v1352 = vld [vmem:[#allocation8 + $0x28] sm:$0xf]
    %v1353 = vld [vmem:[#allocation8 + $0x2c] sm:$0xf]
    %v1354 = vld [vmem:[#allocation8 + $0x30] sm:$0xf]
    %v1355 = vld [vmem:[#allocation8 + $0x34] sm:$0xf]
    %v1356 = vld [vmem:[#allocation8 + $0x38] sm:$0xf]
    %v1357 = vld [vmem:[#allocation8 + $0x3c] sm:$0xf]
    %v1358 = vld [vmem:[#allocation8 + $0x40] sm:$0xf]
    %v1359 = vld [vmem:[#allocation8 + $0x44] sm:$0xf]
    %v1360 = vld [vmem:[#allocation8 + $0x48] sm:$0xf]
    %v1361 = vld [vmem:[#allocation8 + $0x4c] sm:$0xf]
    %v1362 = vld [vmem:[#allocation8 + $0x50] sm:$0xf]
    %v1363 = vld [vmem:[#allocation8 + $0x54] sm:$0xf]
    %v1364 = vld [vmem:[#allocation8 + $0x58] sm:$0xf]
    %v1365 = vld [vmem:[#allocation8 + $0x5c] sm:$0xf]
    %v1366 = vld [vmem:[#allocation8 + $0x60] sm:$0xf]
    %v1367 = vld [vmem:[#allocation8 + $0x64] sm:$0xf]
    %v1368 = vld [vmem:[#allocation8 + $0x68] sm:$0xf]
    %v1369 = vld [vmem:[#allocation8 + $0x6c] sm:$0xf]
    %v1370 = vld [vmem:[#allocation8 + $0x70] sm:$0xf]
    %v1371 = vld [vmem:[#allocation8 + $0x74] sm:$0xf]
    %v1372 = vld [vmem:[#allocation8 + $0x78] sm:$0xf]
    %v1373 = vld [vmem:[#allocation8 + $0x7c] sm:$0xf]
    %v1374 = vld [vmem:[#allocation8 + $0x80] sm:$0xf]
    %v1375 = vld [vmem:[#allocation8 + $0x84] sm:$0xf]
    %v1376 = vld [vmem:[#allocation8 + $0x88] sm:$0xf]
    %v1377 = vld [vmem:[#allocation8 + $0x8c] sm:$0xf]
    %v1378 = vld [vmem:[#allocation8 + $0x90] sm:$0xf]
    %v1379 = vld [vmem:[#allocation8 + $0x94] sm:$0xf]
    %v1380 = vld [vmem:[#allocation8 + $0x98] sm:$0xf]
    %v1381 = vld [vmem:[#allocation8 + $0x9c] sm:$0xf]
    %v1382 = vld [vmem:[#allocation8 + $0xa0] sm:$0xf]
    %v1383 = vld [vmem:[#allocation8 + $0xa4] sm:$0xf]
    %v1384 = vld [vmem:[#allocation8 + $0xa8] sm:$0xf]
    %v1385 = vld [vmem:[#allocation8 + $0xac] sm:$0xf]
    %v1386 = vld [vmem:[#allocation8 + $0xb0] sm:$0xf]
    %v1387 = vld [vmem:[#allocation8 + $0xb4] sm:$0xf]
    %v1388 = vld [vmem:[#allocation8 + $0xb8] sm:$0xf]
    %v1389 = vld [vmem:[#allocation8 + $0xbc] sm:$0xf]
    %v1438 = vunpack.c.l.b16 %v1342
    %v1439 = vunpack.c.l.b16 %v1343
    %v1440 = vunpack.c.l.b16 %v1344
    %v1441 = vunpack.c.l.b16 %v1345
    %v1442 = vunpack.c.l.b16 %v1346
    %v1443 = vunpack.c.l.b16 %v1347
    %v1444 = vunpack.c.l.b16 %v1348
    %v1445 = vunpack.c.l.b16 %v1349
    %v1446 = vunpack.c.l.b16 %v1350
    %v1447 = vunpack.c.l.b16 %v1351
    %v1448 = vunpack.c.l.b16 %v1352
    %v1449 = vunpack.c.l.b16 %v1353
    %v1450 = vunpack.c.l.b16 %v1354
    %v1451 = vunpack.c.l.b16 %v1355
    %v1452 = vunpack.c.l.b16 %v1356
    %v1453 = vunpack.c.l.b16 %v1357
    %v1454 = vunpack.c.l.b16 %v1358
    %v1455 = vunpack.c.l.b16 %v1359
    %v1456 = vunpack.c.l.b16 %v1360
    %v1457 = vunpack.c.l.b16 %v1361
    %v1458 = vunpack.c.l.b16 %v1362
    %v1459 = vunpack.c.l.b16 %v1363
    %v1460 = vunpack.c.l.b16 %v1364
    %v1461 = vunpack.c.l.b16 %v1365
    %v1462 = vunpack.c.l.b16 %v1366
    %v1463 = vunpack.c.l.b16 %v1367
    %v1464 = vunpack.c.l.b16 %v1368
    %v1465 = vunpack.c.l.b16 %v1369
    %v1466 = vunpack.c.l.b16 %v1370
    %v1467 = vunpack.c.l.b16 %v1371
    %v1468 = vunpack.c.l.b16 %v1372
    %v1469 = vunpack.c.l.b16 %v1373
    %v1470 = vunpack.c.l.b16 %v1374
    %v1471 = vunpack.c.l.b16 %v1375
    %v1472 = vunpack.c.l.b16 %v1376
    %v1473 = vunpack.c.l.b16 %v1377
    %v1474 = vunpack.c.l.b16 %v1378
    %v1475 = vunpack.c.l.b16 %v1379
    %v1476 = vunpack.c.l.b16 %v1380
    %v1477 = vunpack.c.l.b16 %v1381
    %v1478 = vunpack.c.l.b16 %v1382
    %v1479 = vunpack.c.l.b16 %v1383
    %v1480 = vunpack.c.l.b16 %v1384
    %v1481 = vunpack.c.l.b16 %v1385
    %v1482 = vunpack.c.l.b16 %v1386
    %v1483 = vunpack.c.l.b16 %v1387
    %v1484 = vunpack.c.l.b16 %v1388
    %v1485 = vunpack.c.l.b16 %v1389
    %v1486 = vpack.c.b16 %v1439, %v1438
    %v1487 = vpack.c.b16 %v1441, %v1440
    %v1488 = vpack.c.b16 %v1443, %v1442
    %v1489 = vpack.c.b16 %v1445, %v1444
    %v1490 = vpack.c.b16 %v1447, %v1446
    %v1491 = vpack.c.b16 %v1449, %v1448
    %v1492 = vpack.c.b16 %v1451, %v1450
    %v1493 = vpack.c.b16 %v1453, %v1452
    %v1494 = vpack.c.b16 %v1455, %v1454
    %v1495 = vpack.c.b16 %v1457, %v1456
    %v1496 = vpack.c.b16 %v1459, %v1458
    %v1497 = vpack.c.b16 %v1461, %v1460
    %v1498 = vpack.c.b16 %v1463, %v1462
    %v1499 = vpack.c.b16 %v1465, %v1464
    %v1500 = vpack.c.b16 %v1467, %v1466
    %v1501 = vpack.c.b16 %v1469, %v1468
    %v1502 = vpack.c.b16 %v1471, %v1470
    %v1503 = vpack.c.b16 %v1473, %v1472
    %v1504 = vpack.c.b16 %v1475, %v1474
    %v1505 = vpack.c.b16 %v1477, %v1476
    %v1506 = vpack.c.b16 %v1479, %v1478
    %v1507 = vpack.c.b16 %v1481, %v1480
    %v1508 = vpack.c.b16 %v1483, %v1482
    %v1509 = vpack.c.b16 %v1485, %v1484
    %1534 = vmatprep.subr.bf16.mxu0 0
    %1535 = vmatpush1.bf16.msra.mxu0 %v1493
    %1536 = vmatprep.subr.bf16.mxu0 0
    %1537 = vmatpush1.bf16.msra.mxu0 %v1492
    %1538 = vmatprep.subr.bf16.mxu0 0
    %1539 = vmatpush1.bf16.msra.mxu0 %v1491
    %1540 = vmatprep.subr.bf16.mxu0 0
    %1541 = vmatpush1.bf16.msra.mxu0 %v1490
    %1542 = vmatprep.subr.bf16.mxu0 0
    %1543 = vmatpush1.bf16.msra.mxu0 %v1489
    %1544 = vmatprep.subr.bf16.mxu0 0
    %1545 = vmatpush1.bf16.msra.mxu0 %v1488
    %1546 = vmatprep.subr.bf16.mxu0 0
    %1547 = vmatpush1.bf16.msra.mxu0 %v1487
    %1548 = vmatprep.subr.bf16.mxu0 0
    %1549 = vmatpush1.bf16.msra.mxu0 %v1486
    %1550 = vmatprep.subr.bf16.mxu0 0
    %1551 = vmatpush2.bf16.msra.mxu0 %v1501
    %1552 = vmatprep.subr.bf16.mxu0 0
    %1553 = vmatpush2.bf16.msra.mxu0 %v1500
    %1554 = vmatprep.subr.bf16.mxu0 0
    %1555 = vmatpush2.bf16.msra.mxu0 %v1499
    %1556 = vmatprep.subr.bf16.mxu0 0
    %1557 = vmatpush2.bf16.msra.mxu0 %v1498
    %1558 = vmatprep.subr.bf16.mxu0 0
    %1559 = vmatpush2.bf16.msra.mxu0 %v1497
    %1560 = vmatprep.subr.bf16.mxu0 0
    %1561 = vmatpush2.bf16.msra.mxu0 %v1496
    %1562 = vmatprep.subr.bf16.mxu0 0
    %1563 = vmatpush2.bf16.msra.mxu0 %v1495
    %1564 = vmatprep.subr.bf16.mxu0 0
    %1565 = vmatpush2.bf16.msra.mxu0 %v1494
    %1566 = vmatprep.mubr.bf16.mxu0 %v1337
    %1567 = vmatmul.mubr.bf16.gmra.mxu0 %v1336
    %v1568 = vpop.f32.mrf.mxu0
    %v1569 = vadd.f32 0.0, %v1568
    %v1570 = vpop.f32.mrf.mxu0
    %v1571 = vpop.f32.mrf.mxu0
    %v1572 = vadd.f32 0.0, %v1571
    %v1573 = vpop.f32.mrf.mxu0
    %1574 = vmatprep.mubr.bf16.mxu0 %v1340
    %1575 = vmatmul.mubr.bf16.gmra.mxu0 %v1339
    %v1576 = vpop.f32.mrf.mxu0
    %v1577 = vadd.f32 0.0, %v1576
    %v1578 = vpop.f32.mrf.mxu0
    %v1579 = vpop.f32.mrf.mxu0
    %v1580 = vadd.f32 0.0, %v1579
    %v1581 = vpop.f32.mrf.mxu0
    %1582 = vdwg.mxu0
    %1583 = vmatprep.subr.bf16.mxu0 0
    %1584 = vmatpush1.bf16.msra.mxu0 %v1509
    %1585 = vmatprep.subr.bf16.mxu0 0
    %1586 = vmatpush1.bf16.msra.mxu0 %v1508
    %1587 = vmatprep.subr.bf16.mxu0 0
    %1588 = vmatpush1.bf16.msra.mxu0 %v1507
    %1589 = vmatprep.subr.bf16.mxu0 0
    %1590 = vmatpush1.bf16.msra.mxu0 %v1506
    %1591 = vmatprep.subr.bf16.mxu0 0
    %1592 = vmatpush1.bf16.msra.mxu0 %v1505
    %1593 = vmatprep.subr.bf16.mxu0 0
    %1594 = vmatpush1.bf16.msra.mxu0 %v1504
    %1595 = vmatprep.subr.bf16.mxu0 0
    %1596 = vmatpush1.bf16.msra.mxu0 %v1503
    %1597 = vmatprep.subr.bf16.mxu0 0
    %1598 = vmatpush1.bf16.msra.mxu0 %v1502
    %1599 = vmatprep.subr.bf16.mxu0 0
    %1600 = vmatpush2.bf16.msra.mxu0 0
    %1601 = vmatprep.subr.bf16.mxu0 0
    %1602 = vmatpush2.bf16.msra.mxu0 0
    %1603 = vmatprep.subr.bf16.mxu0 0
    %1604 = vmatpush2.bf16.msra.mxu0 0
    %1605 = vmatprep.subr.bf16.mxu0 0
    %1606 = vmatpush2.bf16.msra.mxu0 0
    %1607 = vmatprep.subr.bf16.mxu0 0
    %1608 = vmatpush2.bf16.msra.mxu0 0
    %1609 = vmatprep.subr.bf16.mxu0 0
    %1610 = vmatpush2.bf16.msra.mxu0 0
    %1611 = vmatprep.subr.bf16.mxu0 0
    %1612 = vmatpush2.bf16.msra.mxu0 0
    %1613 = vmatprep.subr.bf16.mxu0 0
    %1614 = vmatpush2.bf16.msra.mxu0 0
    %1615 = vmatprep.mubr.bf16.mxu0 0
    %1616 = vmatmul.mubr.bf16.gmra.mxu0 %v1338
    %v1617 = vpop.f32.mrf.mxu0
    %v1618 = vadd.f32 %v1569, %v1617
    %v1619 = vpop.f32.mrf.mxu0
    %v1620 = vpop.f32.mrf.mxu0
    %v1621 = vadd.f32 %v1572, %v1620
    %v1622 = vpop.f32.mrf.mxu0
    %1623 = vmatprep.mubr.bf16.mxu0 0
    %1624 = vmatmul.mubr.bf16.gmra.mxu0 %v1341
    %v1625 = vpop.f32.mrf.mxu0
    %v1626 = vadd.f32 %v1577, %v1625
    %v1627 = vpop.f32.mrf.mxu0
    %v1628 = vpop.f32.mrf.mxu0
    %v1629 = vadd.f32 %v1580, %v1628
    %v1630 = vpop.f32.mrf.mxu0
    %1631 = vdwg.mxu0
    %v1632 = vadd.f32 %v1618, %v1621
    %v1633 = vadd.f32 %v1632, %v1626
    %v1634 = vadd.f32 %v1633, %v1629
    %v1635 = vrot.slane %v1634, 4
    %v1636 = vadd.f32 %v1634, %v1635
    %v1637 = vrot.slane %v1636, 2
    %v1638 = vadd.f32 %v1636, %v1637
    %v1639 = vrot.slane %v1638, 1
    %v1640 = vadd.f32 %v1638, %v1639
    %v1641 = vmul.f32 %v1618, %v1618
    %v1642 = vmul.f32 %v1621, %v1621
    %v1643 = vmul.f32 %v1626, %v1626
    %v1644 = vmul.f32 %v1629, %v1629
    %v1645 = vadd.f32 %v1641, %v1642
    %v1646 = vadd.f32 %v1645, %v1643
    %v1647 = vadd.f32 %v1646, %v1644
    %v1648 = vrot.slane %v1647, 4
    %v1649 = vadd.f32 %v1647, %v1648
    %v1650 = vrot.slane %v1649, 2
    %v1651 = vadd.f32 %v1649, %v1650
    %v1652 = vrot.slane %v1651, 1
    %v1653 = vadd.f32 %v1651, %v1652
    %v1654 = vsel %vm739, %v1640, %v1653
    %1655 = vmatprep.subr.mxu0 0.0
    %1656 = vmatpush1.msra.mxu0 %v394
    %1657 = vmatprep.subr.mxu0 0.0
    %1658 = vmatpush1.msra.mxu0 %v393
    %1659 = vmatprep.subr.mxu0 0.0
    %1660 = vmatpush1.msra.mxu0 %v392
    %1661 = vmatprep.subr.mxu0 0.0
    %1662 = vmatpush1.msra.mxu0 %v391
    %1663 = vmatprep.subr.mxu0 0.0
    %1664 = vmatpush1.msra.mxu0 %v390
    %1665 = vmatprep.subr.mxu0 0.0
    %1666 = vmatpush1.msra.mxu0 %v389
    %1667 = vmatprep.subr.mxu0 0.0
    %1668 = vmatpush1.msra.mxu0 %v388
    %1669 = vmatprep.subr.mxu0 0.0
    %1670 = vmatpush1.msra.mxu0 %v387
    %1671 = vmatprep.subr.mxu0 0.0
    %1672 = vmatpush1.msra.mxu0 %v386
    %1673 = vmatprep.subr.mxu0 0.0
    %1674 = vmatpush1.msra.mxu0 %v385
    %1675 = vmatprep.subr.mxu0 0.0
    %1676 = vmatpush1.msra.mxu0 %v384
    %1677 = vmatprep.subr.mxu0 0.0
    %1678 = vmatpush1.msra.mxu0 %v383
    %1679 = vmatprep.subr.mxu0 0.0
    %1680 = vmatpush1.msra.mxu0 %v382
    %1681 = vmatprep.subr.mxu0 0.0
    %1682 = vmatpush1.msra.mxu0 %v381
    %1683 = vmatprep.subr.mxu0 0.0
    %1684 = vmatpush1.msra.mxu0 %v380
    %1685 = vmatprep.subr.mxu0 0.0
    %1686 = vmatpush1.msra.mxu0 %v379
    %1687 = vmatprep.subr.mxu0 0.0
    %1688 = vmatpush2.msra.mxu0 0.0
    %1689 = vmatprep.subr.mxu0 0.0
    %1690 = vmatpush2.msra.mxu0 0.0
    %1691 = vmatprep.subr.mxu0 0.0
    %1692 = vmatpush2.msra.mxu0 0.0
    %1693 = vmatprep.subr.mxu0 0.0
    %1694 = vmatpush2.msra.mxu0 0.0
    %1695 = vmatprep.subr.mxu0 0.0
    %1696 = vmatpush2.msra.mxu0 0.0
    %1697 = vmatprep.subr.mxu0 0.0
    %1698 = vmatpush2.msra.mxu0 0.0
    %1699 = vmatprep.subr.mxu0 0.0
    %1700 = vmatpush2.msra.mxu0 0.0
    %1701 = vmatprep.subr.mxu0 0.0
    %1702 = vmatpush2.msra.mxu0 0.0
    %1703 = vmatprep.subr.mxu0 0.0
    %1704 = vmatpush2.msra.mxu0 0.0
    %1705 = vmatprep.subr.mxu0 0.0
    %1706 = vmatpush2.msra.mxu0 0.0
    %1707 = vmatprep.subr.mxu0 0.0
    %1708 = vmatpush2.msra.mxu0 0.0
    %1709 = vmatprep.subr.mxu0 0.0
    %1710 = vmatpush2.msra.mxu0 0.0
    %1711 = vmatprep.subr.mxu0 0.0
    %1712 = vmatpush2.msra.mxu0 0.0
    %1713 = vmatprep.subr.mxu0 0.0
    %1714 = vmatpush2.msra.mxu0 0.0
    %1715 = vmatprep.subr.mxu0 0.0
    %1716 = vmatpush2.msra.mxu0 0.0
    %1717 = vmatprep.subr.mxu0 0.0
    %1718 = vmatpush2.msra.mxu0 0.0
    %1719 = vmatprep.mubr.f32.mxu0 0.0
    %1720 = vmatmul.mubr.f32.gmra.mxu0 %v1654
    %v1721 = vpop.f32.mrf.mxu0
    %v1722 = vadd.f32 0.0, %v1721
    %v1723 = vpop.f32.mrf.mxu0
    %1724 = vdwg.mxu0
    %v1725 = vmul.f32 %v1722, %v1722
    %v1727 = vrot.slane %v1725, 7
    %v1729 = vsub.f32 %v1722, %v1727
    %v1730 = vmax.f32 %v1729, 0.0
    %v1731 = vld [vmem:[%s4 + $0x2] sm:$0x1]
    %v1732 = vadd.f32 %v1730, 1e-05
    %v1733 = vrsqrt.pop %v1732
    %v1735 = vrot.slane %v1733, 1
    %v1737 = vmul.f32 %v1731, %v1735
    %v1738 = vld [vmem:[%s5 + $0x2] sm:$0x1]
    %v1739 = vmul.f32 %v1722, %v1737
    %v1740 = vsub.f32 %v1738, %v1739
    %v1741 = vlaneseq
    %v1742 = vshrl.u32 %v1741, 7
    %v1743 = vsub.s32 0, %v1742
    %v1744 = vrot.slane %v1737, %v1743
    %v1745 = vmul.f32 %v1618, %v1744
    %v1746 = vmul.f32 %v1621, %v1744
    %v1747 = vmul.f32 %v1626, %v1744
    %v1748 = vmul.f32 %v1629, %v1744
    %v1749 = vlaneseq
    %v1750 = vshrl.u32 %v1749, 7
    %v1751 = vsub.s32 0, %v1750
    %v1752 = vrot.slane %v1740, %v1751
    %v1753 = vadd.f32 %v1745, %v1752
    %v1754 = vadd.f32 %v1746, %v1752
    %v1755 = vadd.f32 %v1747, %v1752
    %v1756 = vadd.f32 %v1748, %v1752
    %v1757 = vadd.f32 %v1753, %v80
    %v1758 = vadd.f32 %v1754, %v81
    %v1759 = vadd.f32 %v1755, %v82
    %v1760 = vadd.f32 %v1756, %v83
    %vm1761 = vcmp.gt.f32.partialorder %v1757, 0.0
    %vm1762 = vcmp.gt.f32.partialorder %v1758, 0.0
    %vm1763 = vcmp.gt.f32.partialorder %v1759, 0.0
    %vm1764 = vcmp.gt.f32.partialorder %v1760, 0.0
    %v1765 = vmul.f32 %v1757, 0.1
    %v1766 = vmul.f32 %v1758, 0.1
    %v1767 = vmul.f32 %v1759, 0.1
    %v1768 = vmul.f32 %v1760, 0.1
    %v1769 = vsel %vm1761, %v1757, %v1765
    %v1770 = vsel %vm1762, %v1758, %v1766
    %v1771 = vsel %vm1763, %v1759, %v1767
    %v1772 = vsel %vm1764, %v1760, %v1768
    %1773 = vst [vmem:[#allocation10] sm:$0xff] %v1769
    %1774 = vst [vmem:[#allocation10 + $0x8] sm:$0xff] %v1770
    %1775 = vst [vmem:[#allocation10 + $0x10] sm:$0xff] %v1771
    %1776 = vst [vmem:[#allocation10 + $0x18] sm:$0xff] %v1772
    // Predicated region
    $region42: #{tpu_custom_call.1} parent=1 // pred_check
      _
    $region43: #{tpu_custom_call.1} parent=1 // pred_check_branch
      %1778 = sbr.rel (0) target = $region45
    $region44: #{tpu_custom_call.1} parent=1 // pred_region
      %s1780 = ssub.s32 512, 512
      %1781 = vsyncadd [#allocation4], %s1780
      %s1782 = sshll.u32 [#allocation10], 4
      %s1783 = int_to_ptr.vmem [resolvable:$true] %s1782
      %1788 = dma.vmem_to_hbm [thread:$0]  %s1783, 512, %s6, [#allocation4], 128, 128, 8
    $region45: #{tpu_custom_call.1} parent=1 // pred_fallthru
      _
    // Predicated region
    $region46: #{tpu_custom_call.1} parent=1 // pred_check
      _
    $region47: #{tpu_custom_call.1} parent=1 // pred_check_branch
      %1790 = sbr.rel (0) target = $region49
    $region48: #{tpu_custom_call.1} parent=1 // pred_region
      %1791 = dma.done [#allocation4], 512
    $region49: #{tpu_custom_call.1} parent=1 // pred_fallthru
      _
    %1792 = vsyncpa [#allocation3], 1
    %1793 = vsyncpa [#allocation6], 1
    %1794 = vsyncpa [#allocation9], 1
    %1795 = vsyncpa [#allocation4], 1

</llo_original>
